<compile_context>
chip_gen: v6e
topology: v6e:2x2x1
jax: 0.10.0
libtpu: 0.0.40
codegen_flags: <defaults>
</compile_context>

<pallas_src>
import functools
import numpy as np
import jax
import jax.numpy as jnp
from jax.experimental import pallas as pl
from jax.experimental.pallas import tpu as pltpu


# ----------------------------- XLA glue: trilinear upsample -----------------------------
def _upsample_linear_2x(x, axis):
    """PyTorch linear upsample by 2 along `axis` (align_corners=False, half-pixel)."""
    n = x.shape[axis]
    out = jnp.arange(2 * n, dtype=jnp.float32)
    src = jnp.maximum((out + 0.5) / 2.0 - 0.5, 0.0)      # PyTorch clamps negative src
    i0 = jnp.clip(jnp.floor(src).astype(jnp.int32), 0, n - 1)
    i1 = jnp.clip(i0 + 1, 0, n - 1)
    lam = src - i0.astype(jnp.float32)
    x0 = jnp.take(x, i0, axis=axis)
    x1 = jnp.take(x, i1, axis=axis)
    shape = [1] * x.ndim
    shape[axis] = 2 * n
    lam = lam.reshape(shape)
    return x0 * (1.0 - lam) + x1 * lam


def upsample_trilinear_221(x):
    """nn.Upsample(scale_factor=(2, 2, 1), mode='trilinear') on NCDHW input."""
    x = _upsample_linear_2x(x, axis=2)   # D
    x = _upsample_linear_2x(x, axis=3)   # H
    return x                             # W scale = 1 -> identity


# ----------------------------- fused Pallas kernel -----------------------------
def _fused_conv_kernel(x1_ref, x2_ref, mask_ref, w1g_ref, w2s_ref, o_ref, *, Wp):
    """One grid step = (one batch sample, one D-tile).
    x1_ref  : (1, C1, SPt)  skip-path channels, halo-padded, spatial flattened in lanes
    x2_ref  : (1, C2, SPt)  upsampled-path channels, same layout (halo columns are 0)
    mask_ref: (1, SPt)      1.0 at interior pixels, 0.0 on the H/W halo (also the bias row)
    w1g_ref : (1, Cout, 9*C + 1)  conv1 taps, per-sample SqEx gate pre-folded into the Cin
                                  columns; last column = conv1 bias
    w2s_ref : (Cout, 9*Cout + 1)  conv2 taps; last column = conv2 bias
    o_ref   : (1, Cout, SPt)      lane-dense output (halo positions dropped by the wrapper)
    """
    xcat = jnp.concatenate([x1_ref[0], x2_ref[0]], axis=0)       # in-kernel channel concat
    mask = mask_ref[...]                                         # (1, SPt)
    spt = xcat.shape[1]

    def conv3x3_bias_relu(v, w):
        # Stack the 9 tap-shifted copies of v along K plus the mask row (bias column),
        # then a single MXU matmul. Shifts wrap around the tile, but only halo output
        # positions can read wrapped data and those are masked (conv1) or dropped (conv2).
        rows = []
        for t in range(9):                                       # static unroll, 9 taps
            off = (t // 3 - 1) * Wp + (t % 3 - 1)                # static flat tap offset
            rows.append(v if off == 0 else pltpu.roll(v, shift=(-off) % spt, axis=1))
        # TODO(synk): at production SP replace the rolls with static shifted-window reads
        # from a lane-extended VMEM scratch to take the shifts off the XLU.
        stack = jnp.concatenate(rows + [mask], axis=0)           # (9*Cin + 1, SPt)
        return jnp.maximum(jnp.dot(w, stack, preferred_element_type=jnp.float32), 0.0)

    y1 = conv3x3_bias_relu(xcat, w1g_ref[0]) * mask              # re-zero halo = conv2 padding
    y2 = conv3x3_bias_relu(y1, w2s_ref[...])                     # halo outputs dropped later
    o_ref[0] = y2.astype(o_ref.dtype)


def _vmem_limit_bytes():
    """Generation-aware scoped-VMEM ceiling (~75% of physical), safe 32 MiB fallback."""
    try:
        cap = pltpu.get_tpu_info().vmem_capacity_bytes           # v7x 64MiB, v5e/v6e 128MiB
        return int(min(cap * 3 // 4, 100 * 1024 * 1024))
    except Exception:
        return 32 * 1024 * 1024


def unet_up3_sqex_forward(inputs1, inputs2, w1, w2, c1w, c1b, c2w, c2b, *, d_tile=None):
    """UnetUp3_SqEx.forward (is_deconv=False, is_batchnorm=False), fused Pallas path.
    inputs1: (N, out_size, D, H, W) skip;  inputs2: (N, in_size, D/2, H/2, W)."""
    out2 = upsample_trilinear_221(inputs2)                       # (N, C2, D, H, W)
    N, C2, D, H, W = out2.shape
    C1 = inputs1.shape[1]
    C = C1 + C2
    Cout = c1w.shape[0]
    offset = D - inputs1.shape[2]
    o2 = offset // 2
    Hp, Wp = H + 2, W + 2
    SP = D * Hp * Wp

    # ---- two-phase SqEx: squeeze + excitation are O(N*C), run in the wrapper ----
    # avg_pool3d runs on the concat, so the offset-pad zeros of outputs1 are part of the mean.
    mean1 = jnp.sum(inputs1, axis=(2, 3, 4)) / float(D * H * W)  # (N, C1)
    mean2 = jnp.mean(out2, axis=(2, 3, 4))                       # (N, C2)
    mean = jnp.concatenate([mean1, mean2], axis=1)               # (N, C)
    s = jnp.maximum(mean @ w1.T, 0.0)
    gate = jax.nn.sigmoid(s @ w2.T)                              # (N, C), exact sigmoid

    # ---- conv weights: 9 taps stacked along K (k = t*Cin + c) + bias as last column ----
    def stack_taps(wk, b):
        cout, cin = wk.shape[0], wk.shape[1]
        taps = jnp.transpose(wk[:, :, 0], (2, 3, 0, 1)).reshape(9, cout, cin)  # t = 3*u + v
        ws = jnp.transpose(taps, (1, 0, 2)).reshape(cout, 9 * cin)
        return jnp.concatenate([ws, b.reshape(cout, 1)], axis=1)

    w1s = stack_taps(c1w, c1b)                                   # (Cout, 9*C + 1)
    w2s = stack_taps(c2w, c2b)                                   # (Cout, 9*Cout + 1)
    # fold the per-sample SqEx gate into conv1's Cin columns (bias column stays unscaled)
    gate_k = jnp.concatenate([jnp.tile(gate, (1, 9)),
                              jnp.ones((N, 1), gate.dtype)], axis=1)            # (N, 9*C + 1)
    w1g = w1s[None, :, :] * gate_k[:, None, :]                   # (N, Cout, 9*C + 1), tiny

    # ---- one combined pad per input (UNet offset pad + conv halo pad); no HBM concat ----
    # TODO(synk): fold these last pads into the kernel too (zeroed VMEM scratch + interior
    # DMA via pl.ANY refs) to remove the remaining pre-kernel materialization.
    x1h = jnp.pad(inputs1, ((0, 0), (0, 0), (o2, 0),
                            (1, 1 + o2), (1 + o2, 1 + o2))).reshape(N, C1, SP)
    x2h = jnp.pad(out2, ((0, 0), (0, 0), (0, 0), (1, 1), (1, 1))).reshape(N, C2, SP)
    # TODO(synk): at production sizes cast x1h/x2h and the weight stacks to bf16 (keep f32
    # accumulation) to halve HBM/VMEM traffic; kept f32 here for tight numerical tolerance.

    # interior (non-halo) mask; doubles as the bias "ones" row of each K-stack
    mh = (jnp.arange(Hp) >= 1) & (jnp.arange(Hp) <= Hp - 2)
    mw = (jnp.arange(Wp) >= 1) & (jnp.arange(Wp) <= Wp - 2)
    mask = jnp.broadcast_to((mh[:, None] & mw[None, :])[None], (D, Hp, Wp))
    mask = mask.reshape(1, SP).astype(x1h.dtype)

    # ---- grid: (batch, D-tiles); (1,3,3) kernels are depth-independent -> no D halo ----
    if d_tile is None:
        d_tile = D   # TODO(synk): at production sizes pick d_tile from the per-gen VMEM budget
    assert D % d_tile == 0
    n_dt = D // d_tile
    spt = d_tile * Hp * Wp
    if n_dt > 1 and spt % 128 != 0:
        raise ValueError("d_tile must keep the lane dim a multiple of 128")

    K1, K2 = 9 * C + 1, 9 * Cout + 1
    kernel = functools.partial(_fused_conv_kernel, Wp=Wp)
    out = pl.pallas_call(
        kernel,
        out_shape=jax.ShapeDtypeStruct((N, Cout, SP), x1h.dtype),
        grid_spec=pltpu.PrefetchScalarGridSpec(
            num_scalar_prefetch=0,
            grid=(N, n_dt),
            in_specs=[pl.BlockSpec((1, C1, spt), lambda n, d: (n, 0, d)),
                      pl.BlockSpec((1, C2, spt), lambda n, d: (n, 0, d)),
                      pl.BlockSpec((1, spt), lambda n, d: (0, d)),
                      pl.BlockSpec((1, Cout, K1), lambda n, d: (n, 0, 0)),
                      pl.BlockSpec((Cout, K2), lambda n, d: (0, 0))],
            out_specs=pl.BlockSpec((1, Cout, spt), lambda n, d: (n, 0, d)),
        ),
        compiler_params=pltpu.CompilerParams(
            dimension_semantics=("parallel", "parallel"),
            vmem_limit_bytes=_vmem_limit_bytes()),
        # TODO(synk): if DMA is exposed on v5e after D-tiling, bump the activation in_specs
        # to pipeline_mode=pl.Buffered(3).
    )(x1h, x2h, mask, w1g, w2s)

    # drop the halo; layout is already NC(D,Hp,Wp) -> no transposes on the main path
    return out.reshape(N, Cout, D, Hp, Wp)[:, :, :, 1:1 + H, 1:1 + W]


# ----------------------------- pure-JAX reference -----------------------------
def reference_forward(inputs1, inputs2, w1, w2, c1w, c1b, c2w, c2b):
    out2 = upsample_trilinear_221(inputs2)
    offset = out2.shape[2] - inputs1.shape[2]
    o2 = offset // 2
    out1 = jnp.pad(inputs1, ((0, 0), (0, 0), (o2, 0), (0, o2), (o2, o2)))
    x = jnp.concatenate([out1, out2], axis=1)
    N, C, D, H, W = x.shape
    mean = jnp.mean(x, axis=(2, 3, 4))
    s = jnp.maximum(mean @ w1.T, 0.0)
    z = 1.0 / (1.0 + jnp.exp(-(s @ w2.T)))
    gated = x * z[:, :, None, None, None]

    def conv2d_relu(xn, wk, b):
        y = jax.lax.conv_general_dilated(xn, wk, (1, 1), ((1, 1), (1, 1)),
                                         dimension_numbers=('NCHW', 'OIHW', 'NCHW'))
        return jnp.maximum(y + b[None, :, None, None], 0.0)

    g2 = jnp.transpose(gated, (0, 2, 1, 3, 4)).reshape(N * D, C, H, W)
    y1 = conv2d_relu(g2, c1w[:, :, 0], c1b)
    y2 = conv2d_relu(y1, c2w[:, :, 0], c2b)
    Cout = y2.shape[1]
    return jnp.transpose(y2.reshape(N, D, Cout, H, W), (0, 2, 1, 3, 4))


# ----------------------------- main -----------------------------
if __name__ == "__main__":
    N = 2
    in_size, out_size = 8, 4          # n_features = 12, divisible by reduction=6
    D2, H2, W2 = 4, 4, 6
    D, H, W = 2 * D2, 2 * H2, W2

    key = jax.random.PRNGKey(0)
    ks = jax.random.split(key, 8)
    inputs1 = jax.random.normal(ks[0], (N, out_size, D, H, W), jnp.float32)
    inputs2 = jax.random.normal(ks[1], (N, in_size, D2, H2, W2), jnp.float32)

    C = in_size + out_size            # 12
    Cr = C // 6                       # 2
    # SqEx: Linear(C -> C//6, no bias), Linear(C//6 -> C, no bias)
    w1 = 0.4 * jax.random.normal(ks[2], (Cr, C), jnp.float32)
    w2 = 0.4 * jax.random.normal(ks[3], (C, Cr), jnp.float32)
    # UnetConv3(C -> out_size): Conv3d weights (Cout, Cin, 1, 3, 3) + bias
    conv1_w = 0.15 * jax.random.normal(ks[4], (out_size, C, 1, 3, 3), jnp.float32)
    conv1_b = 0.05 * jax.random.normal(ks[5], (out_size,), jnp.float32)
    conv2_w = 0.15 * jax.random.normal(ks[6], (out_size, out_size, 1, 3, 3), jnp.float32)
    conv2_b = 0.05 * jax.random.normal(ks[7], (out_size,), jnp.float32)

    out = unet_up3_sqex_forward(inputs1, inputs2, w1, w2,
                                conv1_w, conv1_b, conv2_w, conv2_b)
    out = jax.block_until_ready(out)

    ref = jax.block_until_ready(
        reference_forward(inputs1, inputs2, w1, w2, conv1_w, conv1_b, conv2_w, conv2_b))

    # 5e-3 tolerance: default TPU matmul precision + re-associated f32 tap accumulation.
    np.testing.assert_allclose(np.asarray(out), np.asarray(ref), rtol=5e-3, atol=5e-3)
    assert out.shape == (N, out_size, D, H, W)
    print("KERNEL_OK")
</pallas_src>

<mosaic_0001>
module attributes {stable_mosaic.version = 11 : i64} {
  func.func @_fused_conv_kernel(%arg0: i32, %arg1: i32, %arg2: memref<1x4x640xf32, #tpu.memory_space<vmem>>, %arg3: memref<1x8x640xf32, #tpu.memory_space<vmem>>, %arg4: memref<1x640xf32, #tpu.memory_space<vmem>>, %arg5: memref<1x4x109xf32, #tpu.memory_space<vmem>>, %arg6: memref<4x37xf32, #tpu.memory_space<vmem>>, %arg7: memref<1x4x640xf32, #tpu.memory_space<vmem>>) attributes {dimension_semantics = [#tpu.dimension_semantics<parallel>, #tpu.dimension_semantics<parallel>], iteration_bounds = array<i64: 2, 1>, scalar_prefetch = 0 : i64, scratch_operands = 0 : i64, tpu.core_type = #tpu.core_type<tc>, window_params = [{transform_indices = @transform_0, window_bounds = array<i64: 1, 4, 640>}, {transform_indices = @transform_1, window_bounds = array<i64: 1, 8, 640>}, {transform_indices = @transform_2, window_bounds = array<i64: 1, 640>}, {transform_indices = @transform_3, window_bounds = array<i64: 1, 4, 109>}, {pipeline_mode = #tpu.pipeline_mode<synchronous>, transform_indices = @transform_4, window_bounds = array<i64: 4, 37>}, {transform_indices = @transform_5, window_bounds = array<i64: 1, 4, 640>}]} {
    %c0 = arith.constant 0 : index
    %c0_0 = arith.constant 0 : index
    %c0_1 = arith.constant 0 : index
    %0 = vector.load %arg2[%c0, %c0_0, %c0_1] : memref<1x4x640xf32, #tpu.memory_space<vmem>>, vector<1x4x640xf32>
    %1 = vector.shape_cast %0 : vector<1x4x640xf32> to vector<4x640xf32>
    %c0_2 = arith.constant 0 : index
    %c0_3 = arith.constant 0 : index
    %c0_4 = arith.constant 0 : index
    %2 = vector.load %arg3[%c0_2, %c0_3, %c0_4] : memref<1x8x640xf32, #tpu.memory_space<vmem>>, vector<1x8x640xf32>
    %3 = vector.shape_cast %2 : vector<1x8x640xf32> to vector<8x640xf32>
    %4 = tpu.concatenate %1, %3 in 0 : vector<4x640xf32>, vector<8x640xf32> -> vector<12x640xf32>
    %c0_5 = arith.constant 0 : index
    %c0_6 = arith.constant 0 : index
    %5 = vector.load %arg4[%c0_5, %c0_6] : memref<1x640xf32, #tpu.memory_space<vmem>>, vector<1x640xf32>
    %c0_7 = arith.constant 0 : index
    %c0_8 = arith.constant 0 : index
    %c0_9 = arith.constant 0 : index
    %6 = vector.load %arg5[%c0_7, %c0_8, %c0_9] : memref<1x4x109xf32, #tpu.memory_space<vmem>>, vector<1x4x109xf32>
    %7 = vector.shape_cast %6 : vector<1x4x109xf32> to vector<4x109xf32>
    %c9_i32 = arith.constant 9 : i32
    %8 = tpu.dynamic_rotate %4 by %c9_i32 dim 1 : vector<12x640xf32>, i32 -> vector<12x640xf32>
    %c8_i32 = arith.constant 8 : i32
    %9 = tpu.dynamic_rotate %4 by %c8_i32 dim 1 : vector<12x640xf32>, i32 -> vector<12x640xf32>
    %c7_i32 = arith.constant 7 : i32
    %10 = tpu.dynamic_rotate %4 by %c7_i32 dim 1 : vector<12x640xf32>, i32 -> vector<12x640xf32>
    %c1_i32 = arith.constant 1 : i32
    %11 = tpu.dynamic_rotate %4 by %c1_i32 dim 1 : vector<12x640xf32>, i32 -> vector<12x640xf32>
    %c639_i32 = arith.constant 639 : i32
    %12 = tpu.dynamic_rotate %4 by %c639_i32 dim 1 : vector<12x640xf32>, i32 -> vector<12x640xf32>
    %c633_i32 = arith.constant 633 : i32
    %13 = tpu.dynamic_rotate %4 by %c633_i32 dim 1 : vector<12x640xf32>, i32 -> vector<12x640xf32>
    %c632_i32 = arith.constant 632 : i32
    %14 = tpu.dynamic_rotate %4 by %c632_i32 dim 1 : vector<12x640xf32>, i32 -> vector<12x640xf32>
    %c631_i32 = arith.constant 631 : i32
    %15 = tpu.dynamic_rotate %4 by %c631_i32 dim 1 : vector<12x640xf32>, i32 -> vector<12x640xf32>
    %16 = tpu.concatenate %8, %9, %10, %11, %4, %12, %13, %14, %15, %5 in 0 : vector<12x640xf32>, vector<12x640xf32>, vector<12x640xf32>, vector<12x640xf32>, vector<12x640xf32>, vector<12x640xf32>, vector<12x640xf32>, vector<12x640xf32>, vector<12x640xf32>, vector<1x640xf32> -> vector<109x640xf32>
    %cst = arith.constant dense<0.000000e+00> : vector<4x640xf32>
    %17 = tpu.matmul %7, %16, %cst {dimension_numbers = #tpu.dot_dimension_numbers<[1], [0], [0], [1], [0, 0, 1, 1], [], []>} : vector<4x109xf32>, vector<109x640xf32>, vector<4x640xf32> -> vector<4x640xf32>
    %cst_10 = arith.constant 0.000000e+00 : f32
    %18 = vector.broadcast %cst_10 : f32 to vector<4x640xf32>
    %19 = arith.maximumf %17, %18 : vector<4x640xf32>
    %20 = vector.broadcast %5 : vector<1x640xf32> to vector<4x640xf32>
    %21 = arith.mulf %19, %20 : vector<4x640xf32>
    %c0_11 = arith.constant 0 : index
    %c0_12 = arith.constant 0 : index
    %22 = vector.load %arg6[%c0_11, %c0_12] : memref<4x37xf32, #tpu.memory_space<vmem>>, vector<4x37xf32>
    %c9_i32_13 = arith.constant 9 : i32
    %23 = tpu.dynamic_rotate %21 by %c9_i32_13 dim 1 : vector<4x640xf32>, i32 -> vector<4x640xf32>
    %c8_i32_14 = arith.constant 8 : i32
    %24 = tpu.dynamic_rotate %21 by %c8_i32_14 dim 1 : vector<4x640xf32>, i32 -> vector<4x640xf32>
    %c7_i32_15 = arith.constant 7 : i32
    %25 = tpu.dynamic_rotate %21 by %c7_i32_15 dim 1 : vector<4x640xf32>, i32 -> vector<4x640xf32>
    %c1_i32_16 = arith.constant 1 : i32
    %26 = tpu.dynamic_rotate %21 by %c1_i32_16 dim 1 : vector<4x640xf32>, i32 -> vector<4x640xf32>
    %c639_i32_17 = arith.constant 639 : i32
    %27 = tpu.dynamic_rotate %21 by %c639_i32_17 dim 1 : vector<4x640xf32>, i32 -> vector<4x640xf32>
    %c633_i32_18 = arith.constant 633 : i32
    %28 = tpu.dynamic_rotate %21 by %c633_i32_18 dim 1 : vector<4x640xf32>, i32 -> vector<4x640xf32>
    %c632_i32_19 = arith.constant 632 : i32
    %29 = tpu.dynamic_rotate %21 by %c632_i32_19 dim 1 : vector<4x640xf32>, i32 -> vector<4x640xf32>
    %c631_i32_20 = arith.constant 631 : i32
    %30 = tpu.dynamic_rotate %21 by %c631_i32_20 dim 1 : vector<4x640xf32>, i32 -> vector<4x640xf32>
    %31 = tpu.concatenate %23, %24, %25, %26, %21, %27, %28, %29, %30, %5 in 0 : vector<4x640xf32>, vector<4x640xf32>, vector<4x640xf32>, vector<4x640xf32>, vector<4x640xf32>, vector<4x640xf32>, vector<4x640xf32>, vector<4x640xf32>, vector<4x640xf32>, vector<1x640xf32> -> vector<37x640xf32>
    %cst_21 = arith.constant dense<0.000000e+00> : vector<4x640xf32>
    %32 = tpu.matmul %22, %31, %cst_21 {dimension_numbers = #tpu.dot_dimension_numbers<[1], [0], [0], [1], [0, 0, 1, 1], [], []>} : vector<4x37xf32>, vector<37x640xf32>, vector<4x640xf32> -> vector<4x640xf32>
    %cst_22 = arith.constant 0.000000e+00 : f32
    %33 = vector.broadcast %cst_22 : f32 to vector<4x640xf32>
    %34 = arith.maximumf %32, %33 : vector<4x640xf32>
    %c0_23 = arith.constant 0 : index
    %c0_24 = arith.constant 0 : index
    %c0_25 = arith.constant 0 : index
    %35 = vector.load %arg7[%c0_23, %c0_24, %c0_25] : memref<1x4x640xf32, #tpu.memory_space<vmem>>, vector<1x4x640xf32>
    %36 = vector.shape_cast %35 : vector<1x4x640xf32> to vector<4x640xf32>
    %37 = vector.shape_cast %34 : vector<4x640xf32> to vector<1x4x640xf32>
    tpu.vector_store %arg7[%c0_23, %c0_24, %c0_25], %37 {strides = array<i32>} : memref<1x4x640xf32, #tpu.memory_space<vmem>>, vector<1x4x640xf32>,
    return
  }
  func.func @transform_0(%arg0: i32, %arg1: i32) -> (i32, i32, i32) {
    %c0_i32 = arith.constant 0 : i32
    %c0_i32_0 = arith.constant 0 : i32
    return %arg0, %c0_i32, %arg1 : i32, i32, i32
  }
  func.func @transform_1(%arg0: i32, %arg1: i32) -> (i32, i32, i32) {
    %c0_i32 = arith.constant 0 : i32
    %c0_i32_0 = arith.constant 0 : i32
    return %arg0, %c0_i32, %arg1 : i32, i32, i32
  }
  func.func @transform_2(%arg0: i32, %arg1: i32) -> (i32, i32) {
    %c0_i32 = arith.constant 0 : i32
    %c0_i32_0 = arith.constant 0 : i32
    return %c0_i32, %arg1 : i32, i32
  }
  func.func @transform_3(%arg0: i32, %arg1: i32) -> (i32, i32, i32) {
    %c0_i32 = arith.constant 0 : i32
    %c0_i32_0 = arith.constant 0 : i32
    %c0_i32_1 = arith.constant 0 : i32
    return %arg0, %c0_i32, %c0_i32_0 : i32, i32, i32
  }
  func.func @transform_4(%arg0: i32, %arg1: i32) -> (i32, i32) {
    %c0_i32 = arith.constant 0 : i32
    %c0_i32_0 = arith.constant 0 : i32
    %c0_i32_1 = arith.constant 0 : i32
    return %c0_i32, %c0_i32_0 : i32, i32
  }
  func.func @transform_5(%arg0: i32, %arg1: i32) -> (i32, i32, i32) {
    %c0_i32 = arith.constant 0 : i32
    %c0_i32_0 = arith.constant 0 : i32
    return %arg0, %c0_i32, %arg1 : i32, i32, i32
  }
}

</mosaic_0001>

<llo_original>
// kernel: tpu_custom_call.1
$region0: #{tpu_custom_call.1}
  #allocation0 [shape = 'u32[]', space=smem, size = 0x4, offset = 0x4, fixed_abs, tag = 'smem constant byte address 0x4 - core index']
  #allocation1 [shape = 'u32[144,128]{1,0:T(1,128)}', space=vmem, size = 0x12000, scoped, tag = 'internal scratch']
  %s0 = inlined_call_operand.hbm [shape: f32[2,4,640], index: 0, kind: input, shape index: {}]
  %s1 = inlined_call_operand.hbm [shape: f32[2,8,640], index: 1, kind: input, shape index: {}]
  %s2 = inlined_call_operand.hbm [shape: f32[1,640], index: 2, kind: input, shape index: {}]
  %s3 = inlined_call_operand.hbm [shape: f32[2,4,109], index: 3, kind: input, shape index: {}]
  %s4 = inlined_call_operand.vmem [shape: f32[4,37], index: 4, kind: input, shape index: {}]
  %s5 = inlined_call_operand.hbm [shape: f32[2,4,640], index: 5, kind: output, shape index: {}]
  %s6 = sld [smem:[#allocation0]]
  $region69: #{tpu_custom_call.1} parent=0
    _
  %s8 = ssub.s32 1, %s6
  %s9 = scalar_select 0, %s8, %s6
  $region1: #{tpu_custom_call.1} parent=0
    #allocation2 [shape = 'u8[20480]{0}', space=vmem, size = 0x5000, scoped, tag = 'input window, operand 0']
    #allocation3 [shape = 's32[2]{0}', space=sflag, size = 0x8, scoped, tag = 'scoped memory for tpu_custom_call.1']
    #allocation4 [shape = 's32[2]{0}', space=sflag, size = 0x8, scoped, tag = 'scoped memory for tpu_custom_call.1']
    #allocation5 [shape = 'u8[40960]{0}', space=vmem, size = 0xa000, scoped, tag = 'input window, operand 1']
    #allocation6 [shape = 's32[2]{0}', space=sflag, size = 0x8, scoped, tag = 'scoped memory for tpu_custom_call.1']
    #allocation7 [shape = 'u8[2560]{0}', space=vmem, size = 0xc00, scoped, tag = 'input window, operand 2, single buffered']
    #allocation8 [shape = 'u8[4096]{0}', space=vmem, size = 0x1000, scoped, tag = 'input window, operand 3']
    #allocation9 [shape = 's32[2]{0}', space=sflag, size = 0x8, scoped, tag = 'scoped memory for tpu_custom_call.1']
    #allocation10 [shape = 'u8[20480]{0}', space=vmem, size = 0x5000, scoped, tag = 'output window, operand 0']
    %10 = vsyncpa [#allocation3], 0
    %s11 = scalar_lea.sflag [#allocation3], 1
    %12 = vsyncpa %s11, 0
    %13 = vsyncpa [#allocation6], 0
    %s14 = scalar_lea.sflag [#allocation6], 1
    %15 = vsyncpa %s14, 0
    %16 = vsyncpa [#allocation9], 0
    %s17 = scalar_lea.sflag [#allocation9], 1
    %18 = vsyncpa %s17, 0
    %19 = vsyncpa [#allocation4], 0
    %s20 = scalar_lea.sflag [#allocation4], 1
    %21 = vsyncpa %s20, 0
    loop: start=0, step=1, limit=4
    $region2: #{tpu_custom_call.1} parent=1 // loop_pre_header
      _
    $region3: #{tpu_custom_call.1} parent=1 // loop_header
      %s23 = sphi 0, %s27
      %p24 = scmp.ge.s32.totalorder %s23, 4
      %s30 = sphi 0, %s42
      %s31 = sphi 0, %s38
      %s32 = sphi 0, %s30
      %s33 = sphi 0, %s31
      %s34 = sphi 0, %s32
      %s35 = sphi 0, %s33
      %s47 = sphi 0, %s49
      %s50 = sphi 0, %s47
      %s51 = sphi 0, %s50
      %s67 = sphi 0, %s51
      %s75 = sphi 0, %s77
      %s78 = sphi 0, %s75
      %s79 = sphi 0, %s78
      %s95 = sphi 0, %s79
      %s101 = sphi 0, %s103
      %s104 = sphi 0, %s101
      %s105 = sphi 0, %s104
      %s121 = sphi 0, %s105
      %s127 = sphi 0, %s129
      %s130 = sphi 0, %s127
      %s131 = sphi 0, %s130
      %s147 = sphi 0, %s131
      %s151 = sphi 0, %s151
      %s153 = sphi 0, %s151
      %s154 = sphi 0, %s153
      %s168 = sphi 0, %s154
      %s176 = sphi 0, %s178
      %s179 = sphi 0, %s176
      %s180 = sphi 0, %s179
      %s196 = sphi 0, %s180
    $region4: #{tpu_custom_call.1} parent=1 // loop_header_branch
      %26 = sbr.rel (%p24) target = $region8
    $region5: #{tpu_custom_call.1} parent=1 // loop_body
      %s28 = ssub.s32 %s23, 1
      %s29 = ssub.s32 %s23, 2
      %s36 = sadd.s32 1, %s31
      %p37 = scmp.ge.s32.totalorder %s36, 1
      %s38 = scalar_select %p37, 0, %s36
      %s39 = sadd.s32 1, %s30
      %s40 = scalar_select %p37, %s39, %s30
      %p41 = scmp.ge.s32.totalorder %s40, 2
      %s42 = scalar_select %p41, 0, %s40
      %s43 = ssub.s32 %s30, %s42
      %s44 = ssub.s32 %s31, %s38
      %s45 = sor.u32 %s43, %s44
      %p46 = scmp.eq.s32.totalorder %s45, 0
      %s48 = sadd.s32 %s47, 1
      %s49 = scalar_select %p46, %s47, %s48
      %p52 = pneg %p46
      %p53 = scmp.eq.s32.totalorder %s23, 1
      %p54 = por %p52, %p53
      %p55 = scmp.ne.s32.totalorder %s47, %s50
      %p56 = scmp.eq.s32.totalorder %s23, 0
      %p57 = por %p55, %p56
      %p58 = scmp.ne.s32.totalorder %s47, %s50
      %p59 = scmp.eq.s32.totalorder %s28, 1
      %p60 = por %p58, %p59
      %p61 = scmp.ne.s32.totalorder %s50, %s51
      %p62 = scmp.eq.s32.totalorder %s28, 0
      %p63 = por %p61, %p62
      %p64 = scmp.ne.s32.totalorder %s50, %s51
      %p65 = scmp.eq.s32.totalorder %s29, 1
      %p66 = por %p64, %p65
      %p68 = scmp.ne.s32.totalorder %s51, %s67
      %p69 = scmp.eq.s32.totalorder %s29, 0
      %p70 = por %p68, %p69
      %s71 = ssub.s32 %s30, %s42
      %s72 = ssub.s32 %s31, %s38
      %s73 = sor.u32 %s71, %s72
      %p74 = scmp.eq.s32.totalorder %s73, 0
      %s76 = sadd.s32 %s75, 1
      %s77 = scalar_select %p74, %s75, %s76
      %p80 = pneg %p74
      %p81 = scmp.eq.s32.totalorder %s23, 1
      %p82 = por %p80, %p81
      %p83 = scmp.ne.s32.totalorder %s75, %s78
      %p84 = scmp.eq.s32.totalorder %s23, 0
      %p85 = por %p83, %p84
      %p86 = scmp.ne.s32.totalorder %s75, %s78
      %p87 = scmp.eq.s32.totalorder %s28, 1
      %p88 = por %p86, %p87
      %p89 = scmp.ne.s32.totalorder %s78, %s79
      %p90 = scmp.eq.s32.totalorder %s28, 0
      %p91 = por %p89, %p90
      %p92 = scmp.ne.s32.totalorder %s78, %s79
      %p93 = scmp.eq.s32.totalorder %s29, 1
      %p94 = por %p92, %p93
      %p96 = scmp.ne.s32.totalorder %s79, %s95
      %p97 = scmp.eq.s32.totalorder %s29, 0
      %p98 = por %p96, %p97
      %s99 = ssub.s32 %s31, %s38
      %p100 = scmp.eq.s32.totalorder %s99, 0
      %s102 = sadd.s32 %s101, 1
      %s103 = scalar_select %p100, %s101, %s102
      %p106 = pneg %p100
      %p107 = scmp.eq.s32.totalorder %s23, 1
      %p108 = por %p106, %p107
      %p109 = scmp.ne.s32.totalorder %s101, %s104
      %p110 = scmp.eq.s32.totalorder %s23, 0
      %p111 = por %p109, %p110
      %p112 = scmp.ne.s32.totalorder %s101, %s104
      %p113 = scmp.eq.s32.totalorder %s28, 1
      %p114 = por %p112, %p113
      %p115 = scmp.ne.s32.totalorder %s104, %s105
      %p116 = scmp.eq.s32.totalorder %s28, 0
      %p117 = por %p115, %p116
      %p118 = scmp.ne.s32.totalorder %s104, %s105
      %p119 = scmp.eq.s32.totalorder %s29, 1
      %p120 = por %p118, %p119
      %p122 = scmp.ne.s32.totalorder %s105, %s121
      %p123 = scmp.eq.s32.totalorder %s29, 0
      %p124 = por %p122, %p123
      %s125 = ssub.s32 %s30, %s42
      %p126 = scmp.eq.s32.totalorder %s125, 0
      %s128 = sadd.s32 %s127, 1
      %s129 = scalar_select %p126, %s127, %s128
      %p132 = pneg %p126
      %p133 = scmp.eq.s32.totalorder %s23, 1
      %p134 = por %p132, %p133
      %p135 = scmp.ne.s32.totalorder %s127, %s130
      %p136 = scmp.eq.s32.totalorder %s23, 0
      %p137 = por %p135, %p136
      %p138 = scmp.ne.s32.totalorder %s127, %s130
      %p139 = scmp.eq.s32.totalorder %s28, 1
      %p140 = por %p138, %p139
      %p141 = scmp.ne.s32.totalorder %s130, %s131
      %p142 = scmp.eq.s32.totalorder %s28, 0
      %p143 = por %p141, %p142
      %p144 = scmp.ne.s32.totalorder %s130, %s131
      %p145 = scmp.eq.s32.totalorder %s29, 1
      %p146 = por %p144, %p145
      %p148 = scmp.ne.s32.totalorder %s131, %s147
      %p149 = scmp.eq.s32.totalorder %s29, 0
      %p150 = por %p148, %p149
      %s152 = sadd.s32 %s151, 1
      %p155 = scmp.eq.s32.totalorder %s23, 1
      %p156 = scmp.ne.s32.totalorder %s151, %s153
      %p157 = scmp.eq.s32.totalorder %s23, 0
      %p158 = por %p156, %p157
      %p159 = scmp.ne.s32.totalorder %s151, %s153
      %p160 = scmp.eq.s32.totalorder %s28, 1
      %p161 = por %p159, %p160
      %p162 = scmp.ne.s32.totalorder %s153, %s154
      %p163 = scmp.eq.s32.totalorder %s28, 0
      %p164 = por %p162, %p163
      %p165 = scmp.ne.s32.totalorder %s153, %s154
      %p166 = scmp.eq.s32.totalorder %s29, 1
      %p167 = por %p165, %p166
      %p169 = scmp.ne.s32.totalorder %s154, %s168
      %p170 = scmp.eq.s32.totalorder %s29, 0
      %p171 = por %p169, %p170
      %s172 = ssub.s32 %s30, %s42
      %s173 = ssub.s32 %s31, %s38
      %s174 = sor.u32 %s172, %s173
      %p175 = scmp.eq.s32.totalorder %s174, 0
      %s177 = sadd.s32 %s176, 1
      %s178 = scalar_select %p175, %s176, %s177
      %p181 = pneg %p175
      %p182 = scmp.eq.s32.totalorder %s23, 1
      %p183 = por %p181, %p182
      %p184 = scmp.ne.s32.totalorder %s176, %s179
      %p185 = scmp.eq.s32.totalorder %s23, 0
      %p186 = por %p184, %p185
      %p187 = scmp.ne.s32.totalorder %s176, %s179
      %p188 = scmp.eq.s32.totalorder %s28, 1
      %p189 = por %p187, %p188
      %p190 = scmp.ne.s32.totalorder %s179, %s180
      %p191 = scmp.eq.s32.totalorder %s28, 0
      %p192 = por %p190, %p191
      %p193 = scmp.ne.s32.totalorder %s179, %s180
      %p194 = scmp.eq.s32.totalorder %s29, 1
      %p195 = por %p193, %p194
      %p197 = scmp.ne.s32.totalorder %s180, %s196
      %p198 = scmp.eq.s32.totalorder %s29, 0
      %p199 = por %p197, %p198
      %p200 = scmp.le.s32.totalorder 1, %s23
      %p201 = scmp.lt.s32.totalorder %s23, 3
      %p202 = pnand %p200, %p201
      %p203 = pneg %p202
      // Predicated region
      $region9: #{tpu_custom_call.1} parent=5 // pred_check
        _
      $region10: #{tpu_custom_call.1} parent=5 // pred_check_branch
        %205 = sbr.rel (%p202) target = $region12
      $region11: #{tpu_custom_call.1} parent=5 // pred_region
        %s206 = ssub.s32 %s23, 1
        // Predicated region
        $region13: #{tpu_custom_call.1} parent=11 // pred_check
          %p207 = pneg %p117
        $region14: #{tpu_custom_call.1} parent=11 // pred_check_branch
          %209 = sbr.rel (%p207) target = $region16
        $region15: #{tpu_custom_call.1} parent=11 // pred_region
          %s210 = smul.u32 5, %s33
          %s212 = ssub.s32 80, 80
          %213 = vsyncadd [#allocation6], %s212
          %s214 = smul.addr %s210, 16
          %s215 = scalar_lea.hbm %s2, %s214
          %s217 = sshll.u32 [#allocation7], 4
          %s218 = int_to_ptr.vmem [resolvable:$true] %s217
          %220 = dma.hbm_to_vmem [thread:$0]  %s215, 80, %s218, [#allocation6]
        $region16: #{tpu_custom_call.1} parent=11 // pred_fallthru
          _
        // Predicated region
        $region17: #{tpu_custom_call.1} parent=11 // pred_check
          %p221 = pneg %p164
        $region18: #{tpu_custom_call.1} parent=11 // pred_check_branch
          %223 = sbr.rel (%p221) target = $region20
        $region19: #{tpu_custom_call.1} parent=11 // pred_region
          _
        $region20: #{tpu_custom_call.1} parent=11 // pred_fallthru
          _
      $region12: #{tpu_custom_call.1} parent=5 // pred_fallthru
        _
      %p224 = scmp.lt.s32.totalorder %s23, 2
      // Predicated region
      $region21: #{tpu_custom_call.1} parent=5 // pred_check
        %p225 = pneg %p224
      $region22: #{tpu_custom_call.1} parent=5 // pred_check_branch
        %227 = sbr.rel (%p225) target = $region24
      $region23: #{tpu_custom_call.1} parent=5 // pred_region
        // Predicated region
        $region25: #{tpu_custom_call.1} parent=23 // pred_check
          %p228 = pneg %p57
        $region26: #{tpu_custom_call.1} parent=23 // pred_check_branch
          %230 = sbr.rel (%p228) target = $region28
        $region27: #{tpu_custom_call.1} parent=23 // pred_region
          %s231 = sand.u32 %s47, 1
          %s232 = scalar_lea.sflag [#allocation3], %s231
          %s233 = sand.u32 %s47, 1
          %s234 = smul.addr %s233, 20
          %s235 = scalar_lea.vmem [#allocation2], %s234
          %s236 = smul.u32 5, %s31
          %s238 = ssub.s32 320, 320
          %239 = vsyncadd %s232, %s238
          %s240 = smul.addr %s30, 5
          %s241 = sadd.s32 %s236, %s240
          %s242 = smul.addr %s241, 64
          %s243 = scalar_lea.hbm %s0, %s242
          %s245 = sshll.u32 %s235, 4
          %s246 = int_to_ptr.vmem [resolvable:$true] %s245
          %248 = dma.hbm_to_vmem [thread:$0]  %s243, 320, %s246, %s232
        $region28: #{tpu_custom_call.1} parent=23 // pred_fallthru
          _
        // Predicated region
        $region29: #{tpu_custom_call.1} parent=23 // pred_check
          %p249 = pneg %p85
        $region30: #{tpu_custom_call.1} parent=23 // pred_check_branch
          %251 = sbr.rel (%p249) target = $region32
        $region31: #{tpu_custom_call.1} parent=23 // pred_region
          %s252 = sand.u32 %s23, 1
          %s253 = scalar_lea.sflag [#allocation6], %s252
          %s254 = sand.u32 %s75, 1
          %s255 = smul.addr %s254, 40
          %s256 = scalar_lea.vmem [#allocation5], %s255
          %s257 = smul.u32 5, %s31
          %s259 = ssub.s32 640, 640
          %260 = vsyncadd %s253, %s259
          %s261 = smul.addr %s30, 5
          %s262 = sadd.s32 %s257, %s261
          %s263 = smul.addr %s262, 128
          %s264 = scalar_lea.hbm %s1, %s263
          %s266 = sshll.u32 %s256, 4
          %s267 = int_to_ptr.vmem [resolvable:$true] %s266
          %269 = dma.hbm_to_vmem [thread:$0]  %s264, 640, %s267, %s253
        $region32: #{tpu_custom_call.1} parent=23 // pred_fallthru
          _
        // Predicated region
        $region33: #{tpu_custom_call.1} parent=23 // pred_check
          %p270 = pneg %p137
        $region34: #{tpu_custom_call.1} parent=23 // pred_check_branch
          %272 = sbr.rel (%p270) target = $region36
        $region35: #{tpu_custom_call.1} parent=23 // pred_region
          %s273 = sand.u32 %s127, 1
          %s274 = scalar_lea.sflag [#allocation9], %s273
          %s275 = sand.u32 %s127, 1
          %s276 = smul.addr %s275, 4
          %s277 = scalar_lea.vmem [#allocation8], %s276
          %s279 = ssub.s32 64, 64
          %280 = vsyncadd %s274, %s279
          %s281 = smul.addr %s30, 64
          %s282 = scalar_lea.hbm %s3, %s281
          %s284 = sshll.u32 %s277, 4
          %s285 = int_to_ptr.vmem [resolvable:$true] %s284
          %287 = dma.hbm_to_vmem [thread:$0]  %s282, 64, %s285, %s274
        $region36: #{tpu_custom_call.1} parent=23 // pred_fallthru
          _
      $region24: #{tpu_custom_call.1} parent=5 // pred_fallthru
        _
      %p288 = scmp.le.s32.totalorder 1, %s23
      %p289 = scmp.lt.s32.totalorder %s23, 3
      %p290 = pnand %p288, %p289
      %p291 = pneg %p290
      // Predicated region
      $region37: #{tpu_custom_call.1} parent=5 // pred_check
        _
      $region38: #{tpu_custom_call.1} parent=5 // pred_check_branch
        %293 = sbr.rel (%p290) target = $region40
      $region39: #{tpu_custom_call.1} parent=5 // pred_region
        %s294 = ssub.s32 %s23, 1
        %s295 = sand.u32 %s50, 1
        %s296 = scalar_lea.sflag [#allocation3], %s295
        %s297 = sand.u32 %s50, 1
        %s298 = smul.addr %s297, 20
        %s299 = scalar_lea.vmem [#allocation2], %s298
        // Predicated region
        $region41: #{tpu_custom_call.1} parent=39 // pred_check
          %p300 = pneg %p63
        $region42: #{tpu_custom_call.1} parent=39 // pred_check_branch
          %302 = sbr.rel (%p300) target = $region44
        $region43: #{tpu_custom_call.1} parent=39 // pred_region
          %303 = dma.done %s296, 320
        $region44: #{tpu_custom_call.1} parent=39 // pred_fallthru
          _
        %s304 = sand.u32 %s28, 1
        %s305 = scalar_lea.sflag [#allocation6], %s304
        %s306 = sand.u32 %s78, 1
        %s307 = smul.addr %s306, 40
        %s308 = scalar_lea.vmem [#allocation5], %s307
        // Predicated region
        $region45: #{tpu_custom_call.1} parent=39 // pred_check
          %p309 = pneg %p91
        $region46: #{tpu_custom_call.1} parent=39 // pred_check_branch
          %311 = sbr.rel (%p309) target = $region48
        $region47: #{tpu_custom_call.1} parent=39 // pred_region
          %312 = dma.done %s305, 640
        $region48: #{tpu_custom_call.1} parent=39 // pred_fallthru
          _
        // Predicated region
        $region49: #{tpu_custom_call.1} parent=39 // pred_check
          %p313 = pneg %p117
        $region50: #{tpu_custom_call.1} parent=39 // pred_check_branch
          %315 = sbr.rel (%p313) target = $region52
        $region51: #{tpu_custom_call.1} parent=39 // pred_region
          %316 = dma.done [#allocation6], 80
        $region52: #{tpu_custom_call.1} parent=39 // pred_fallthru
          _
        %s317 = sand.u32 %s130, 1
        %s318 = scalar_lea.sflag [#allocation9], %s317
        %s319 = sand.u32 %s130, 1
        %s320 = smul.addr %s319, 4
        %s321 = scalar_lea.vmem [#allocation8], %s320
        // Predicated region
        $region53: #{tpu_custom_call.1} parent=39 // pred_check
          %p322 = pneg %p143
        $region54: #{tpu_custom_call.1} parent=39 // pred_check_branch
          %324 = sbr.rel (%p322) target = $region56
        $region55: #{tpu_custom_call.1} parent=39 // pred_region
          %325 = dma.done %s318, 64
        $region56: #{tpu_custom_call.1} parent=39 // pred_fallthru
          _
        %s326 = sand.u32 %s50, 1
        %s327 = scalar_lea.sflag [#allocation3], %s326
        %s328 = sand.u32 %s50, 1
        %s329 = smul.addr %s328, 20
        %s330 = scalar_lea.vmem [#allocation2], %s329
        %p331 = pneg %p63
        %p332 = pneg %p60
        %s333 = sand.u32 %s28, 1
        %s334 = scalar_lea.sflag [#allocation6], %s333
        %s335 = sand.u32 %s78, 1
        %s336 = smul.addr %s335, 40
        %s337 = scalar_lea.vmem [#allocation5], %s336
        %p338 = pneg %p91
        %p339 = pneg %p88
        %p340 = pneg %p117
        %p341 = pneg %p114
        %s342 = sand.u32 %s130, 1
        %s343 = scalar_lea.sflag [#allocation9], %s342
        %s344 = sand.u32 %s130, 1
        %s345 = smul.addr %s344, 4
        %s346 = scalar_lea.vmem [#allocation8], %s345
        %p347 = pneg %p143
        %p348 = pneg %p140
        %p349 = pneg %p164
        %p350 = pneg %p161
        %p351 = pneg %p192
        %p352 = pneg %p189
        %s353 = sand.u32 %s179, 1
        %s354 = scalar_lea.sflag [#allocation4], %s353
        %s355 = sand.u32 %s179, 1
        %s356 = smul.addr %s355, 20
        %s357 = scalar_lea.vmem [#allocation10], %s356
        %s358 = smul.u32 5, %s33
        %s359 = smul.u32 5, %s33
        %s360 = smul.u32 5, %s33
        %s361 = smul.u32 5, %s33
        %v362 = vld [vmem:[%s299] sm:$0xff]
        %v363 = vld [vmem:[%s299 + $0x8] sm:$0xff]
        %v364 = vld [vmem:[%s299 + $0x10] sm:$0xf]
        %v365 = vld [vmem:[%s308] sm:$0xff]
        %v366 = vld [vmem:[%s308 + $0x8] sm:$0xff]
        %v367 = vld [vmem:[%s308 + $0x10] sm:$0xff]
        %v368 = vld [vmem:[%s308 + $0x18] sm:$0xff]
        %v369 = vld [vmem:[%s308 + $0x20] sm:$0xff]
        %v372 = vcombine.high %v362, %v362
        %v373 = vcombine.high %v363, %v363
        %v381 = vrot.slane %v365, 4
        %v382 = vrot.slane %v366, 4
        %v383 = vrot.slane %v367, 4
        %v384 = vrot.slane %v368, 4
        %v385 = vrot.slane %v369, 4
        %vm391 = vcmask 1043456
        %v392 = vsel %vm391, %v362, %v381
        %v393 = vsel %vm391, %v372, %v382
        %v394 = vsel %vm391, %v363, %v383
        %v395 = vsel %vm391, %v373, %v384
        %v396 = vsel %vm391, %v364, %v385
        %v397 = vld [vmem:[#allocation7] sm:$0x1f]
        %v398 = vld [vmem:[%s321] sm:$0xf]
        %399 = vrot.lane.b32.xlu0 %v392, 9
        %v400 = vpop.permute.xlu0 %399
        %401 = vrot.lane.b32.xlu0 %v381, 9
        %v402 = vpop.permute.xlu0 %401
        %403 = vrot.lane.b32.xlu0 %v393, 9
        %v404 = vpop.permute.xlu0 %403
        %405 = vrot.lane.b32.xlu0 %v382, 9
        %v406 = vpop.permute.xlu0 %405
        %407 = vrot.lane.b32.xlu0 %v394, 9
        %v408 = vpop.permute.xlu0 %407
        %409 = vrot.lane.b32.xlu0 %v383, 9
        %v410 = vpop.permute.xlu0 %409
        %411 = vrot.lane.b32.xlu0 %v395, 9
        %v412 = vpop.permute.xlu0 %411
        %413 = vrot.lane.b32.xlu0 %v384, 9
        %v414 = vpop.permute.xlu0 %413
        %415 = vrot.lane.b32.xlu0 %v396, 9
        %v416 = vpop.permute.xlu0 %415
        %417 = vrot.lane.b32.xlu0 %v385, 9
        %v418 = vpop.permute.xlu0 %417
        %v419 = vlaneseq
        %v420 = vand.u32 %v419, 127
        %vm421 = vcmp.lt.s32.totalorder %v420, 9
        %v422 = vsel %vm421, %v412, %v416
        %v423 = vsel %vm421, %v414, %v418
        %v424 = vsel %vm421, %v408, %v412
        %v425 = vsel %vm421, %v410, %v414
        %v426 = vsel %vm421, %v404, %v408
        %v427 = vsel %vm421, %v406, %v410
        %v428 = vsel %vm421, %v400, %v404
        %v429 = vsel %vm421, %v402, %v406
        %v430 = vsel %vm421, %v416, %v400
        %v431 = vsel %vm421, %v418, %v402
        %432 = vrot.lane.b32.xlu0 %v392, 8
        %v433 = vpop.permute.xlu0 %432
        %434 = vrot.lane.b32.xlu0 %v381, 8
        %v435 = vpop.permute.xlu0 %434
        %436 = vrot.lane.b32.xlu0 %v393, 8
        %v437 = vpop.permute.xlu0 %436
        %438 = vrot.lane.b32.xlu0 %v382, 8
        %v439 = vpop.permute.xlu0 %438
        %440 = vrot.lane.b32.xlu0 %v394, 8
        %v441 = vpop.permute.xlu0 %440
        %442 = vrot.lane.b32.xlu0 %v383, 8
        %v443 = vpop.permute.xlu0 %442
        %444 = vrot.lane.b32.xlu0 %v395, 8
        %v445 = vpop.permute.xlu0 %444
        %446 = vrot.lane.b32.xlu0 %v384, 8
        %v447 = vpop.permute.xlu0 %446
        %448 = vrot.lane.b32.xlu0 %v396, 8
        %v449 = vpop.permute.xlu0 %448
        %450 = vrot.lane.b32.xlu0 %v385, 8
        %v451 = vpop.permute.xlu0 %450
        %vm452 = vcmp.lt.s32.totalorder %v420, 8
        %v453 = vsel %vm452, %v445, %v449
        %v454 = vsel %vm452, %v447, %v451
        %v455 = vsel %vm452, %v441, %v445
        %v456 = vsel %vm452, %v443, %v447
        %v457 = vsel %vm452, %v437, %v441
        %v458 = vsel %vm452, %v439, %v443
        %v459 = vsel %vm452, %v433, %v437
        %v460 = vsel %vm452, %v435, %v439
        %v461 = vsel %vm452, %v449, %v433
        %v462 = vsel %vm452, %v451, %v435
        %463 = vrot.lane.b32.xlu0 %v392, 7
        %v464 = vpop.permute.xlu0 %463
        %465 = vrot.lane.b32.xlu0 %v381, 7
        %v466 = vpop.permute.xlu0 %465
        %467 = vrot.lane.b32.xlu0 %v393, 7
        %v468 = vpop.permute.xlu0 %467
        %469 = vrot.lane.b32.xlu0 %v382, 7
        %v470 = vpop.permute.xlu0 %469
        %471 = vrot.lane.b32.xlu0 %v394, 7
        %v472 = vpop.permute.xlu0 %471
        %473 = vrot.lane.b32.xlu0 %v383, 7
        %v474 = vpop.permute.xlu0 %473
        %475 = vrot.lane.b32.xlu0 %v395, 7
        %v476 = vpop.permute.xlu0 %475
        %477 = vrot.lane.b32.xlu0 %v384, 7
        %v478 = vpop.permute.xlu0 %477
        %479 = vrot.lane.b32.xlu0 %v396, 7
        %v480 = vpop.permute.xlu0 %479
        %481 = vrot.lane.b32.xlu0 %v385, 7
        %v482 = vpop.permute.xlu0 %481
        %vm483 = vcmp.lt.s32.totalorder %v420, 7
        %v484 = vsel %vm483, %v476, %v480
        %v485 = vsel %vm483, %v478, %v482
        %v486 = vsel %vm483, %v472, %v476
        %v487 = vsel %vm483, %v474, %v478
        %v488 = vsel %vm483, %v468, %v472
        %v489 = vsel %vm483, %v470, %v474
        %v490 = vsel %vm483, %v464, %v468
        %v491 = vsel %vm483, %v466, %v470
        %v492 = vsel %vm483, %v480, %v464
        %v493 = vsel %vm483, %v482, %v466
        %494 = vrot.lane.b32.xlu0 %v392, 1
        %v495 = vpop.permute.xlu0 %494
        %496 = vrot.lane.b32.xlu0 %v381, 1
        %v497 = vpop.permute.xlu0 %496
        %498 = vrot.lane.b32.xlu0 %v393, 1
        %v499 = vpop.permute.xlu0 %498
        %500 = vrot.lane.b32.xlu0 %v382, 1
        %v501 = vpop.permute.xlu0 %500
        %502 = vrot.lane.b32.xlu0 %v394, 1
        %v503 = vpop.permute.xlu0 %502
        %504 = vrot.lane.b32.xlu0 %v383, 1
        %v505 = vpop.permute.xlu0 %504
        %506 = vrot.lane.b32.xlu0 %v395, 1
        %v507 = vpop.permute.xlu0 %506
        %508 = vrot.lane.b32.xlu0 %v384, 1
        %v509 = vpop.permute.xlu0 %508
        %510 = vrot.lane.b32.xlu0 %v396, 1
        %v511 = vpop.permute.xlu0 %510
        %512 = vrot.lane.b32.xlu0 %v385, 1
        %v513 = vpop.permute.xlu0 %512
        %vm514 = vcmp.lt.s32.totalorder %v420, 1
        %v515 = vsel %vm514, %v507, %v511
        %v516 = vsel %vm514, %v509, %v513
        %v517 = vsel %vm514, %v503, %v507
        %v518 = vsel %vm514, %v505, %v509
        %v519 = vsel %vm514, %v499, %v503
        %v520 = vsel %vm514, %v501, %v505
        %v521 = vsel %vm514, %v495, %v499
        %v522 = vsel %vm514, %v497, %v501
        %v523 = vsel %vm514, %v511, %v495
        %v524 = vsel %vm514, %v513, %v497
        %525 = vrot.lane.b32.xlu0 %v392, 127
        %v526 = vpop.permute.xlu0 %525
        %527 = vrot.lane.b32.xlu0 %v381, 127
        %v528 = vpop.permute.xlu0 %527
        %529 = vrot.lane.b32.xlu0 %v393, 127
        %v530 = vpop.permute.xlu0 %529
        %531 = vrot.lane.b32.xlu0 %v382, 127
        %v532 = vpop.permute.xlu0 %531
        %533 = vrot.lane.b32.xlu0 %v394, 127
        %v534 = vpop.permute.xlu0 %533
        %535 = vrot.lane.b32.xlu0 %v383, 127
        %v536 = vpop.permute.xlu0 %535
        %537 = vrot.lane.b32.xlu0 %v395, 127
        %v538 = vpop.permute.xlu0 %537
        %539 = vrot.lane.b32.xlu0 %v384, 127
        %v540 = vpop.permute.xlu0 %539
        %541 = vrot.lane.b32.xlu0 %v396, 127
        %v542 = vpop.permute.xlu0 %541
        %543 = vrot.lane.b32.xlu0 %v385, 127
        %v544 = vpop.permute.xlu0 %543
        %vm545 = vcmp.lt.s32.totalorder %v420, 127
        %v546 = vsel %vm545, %v538, %v542
        %v547 = vsel %vm545, %v540, %v544
        %v548 = vsel %vm545, %v534, %v538
        %v549 = vsel %vm545, %v536, %v540
        %v550 = vsel %vm545, %v530, %v534
        %v551 = vsel %vm545, %v532, %v536
        %v552 = vsel %vm545, %v526, %v530
        %v553 = vsel %vm545, %v528, %v532
        %v554 = vsel %vm545, %v542, %v526
        %v555 = vsel %vm545, %v544, %v528
        %556 = vrot.lane.b32.xlu0 %v392, 121
        %v557 = vpop.permute.xlu0 %556
        %558 = vrot.lane.b32.xlu0 %v381, 121
        %v559 = vpop.permute.xlu0 %558
        %560 = vrot.lane.b32.xlu0 %v393, 121
        %v561 = vpop.permute.xlu0 %560
        %562 = vrot.lane.b32.xlu0 %v382, 121
        %v563 = vpop.permute.xlu0 %562
        %564 = vrot.lane.b32.xlu0 %v394, 121
        %v565 = vpop.permute.xlu0 %564
        %566 = vrot.lane.b32.xlu0 %v383, 121
        %v567 = vpop.permute.xlu0 %566
        %568 = vrot.lane.b32.xlu0 %v395, 121
        %v569 = vpop.permute.xlu0 %568
        %570 = vrot.lane.b32.xlu0 %v384, 121
        %v571 = vpop.permute.xlu0 %570
        %572 = vrot.lane.b32.xlu0 %v396, 121
        %v573 = vpop.permute.xlu0 %572
        %574 = vrot.lane.b32.xlu0 %v385, 121
        %v575 = vpop.permute.xlu0 %574
        %vm576 = vcmp.lt.s32.totalorder %v420, 121
        %v577 = vsel %vm576, %v569, %v573
        %v578 = vsel %vm576, %v571, %v575
        %v579 = vsel %vm576, %v565, %v569
        %v580 = vsel %vm576, %v567, %v571
        %v581 = vsel %vm576, %v561, %v565
        %v582 = vsel %vm576, %v563, %v567
        %v583 = vsel %vm576, %v557, %v561
        %v584 = vsel %vm576, %v559, %v563
        %v585 = vsel %vm576, %v573, %v557
        %v586 = vsel %vm576, %v575, %v559
        %587 = vrot.lane.b32.xlu0 %v392, 120
        %v588 = vpop.permute.xlu0 %587
        %589 = vrot.lane.b32.xlu0 %v381, 120
        %v590 = vpop.permute.xlu0 %589
        %591 = vrot.lane.b32.xlu0 %v393, 120
        %v592 = vpop.permute.xlu0 %591
        %593 = vrot.lane.b32.xlu0 %v382, 120
        %v594 = vpop.permute.xlu0 %593
        %595 = vrot.lane.b32.xlu0 %v394, 120
        %v596 = vpop.permute.xlu0 %595
        %597 = vrot.lane.b32.xlu0 %v383, 120
        %v598 = vpop.permute.xlu0 %597
        %599 = vrot.lane.b32.xlu0 %v395, 120
        %v600 = vpop.permute.xlu0 %599
        %601 = vrot.lane.b32.xlu0 %v384, 120
        %v602 = vpop.permute.xlu0 %601
        %603 = vrot.lane.b32.xlu0 %v396, 120
        %v604 = vpop.permute.xlu0 %603
        %605 = vrot.lane.b32.xlu0 %v385, 120
        %v606 = vpop.permute.xlu0 %605
        %vm607 = vcmp.lt.s32.totalorder %v420, 120
        %v608 = vsel %vm607, %v600, %v604
        %v609 = vsel %vm607, %v602, %v606
        %v610 = vsel %vm607, %v596, %v600
        %v611 = vsel %vm607, %v598, %v602
        %v612 = vsel %vm607, %v592, %v596
        %v613 = vsel %vm607, %v594, %v598
        %v614 = vsel %vm607, %v588, %v592
        %v615 = vsel %vm607, %v590, %v594
        %v616 = vsel %vm607, %v604, %v588
        %v617 = vsel %vm607, %v606, %v590
        %618 = vrot.lane.b32.xlu0 %v392, 119
        %v619 = vpop.permute.xlu0 %618
        %620 = vrot.lane.b32.xlu0 %v381, 119
        %v621 = vpop.permute.xlu0 %620
        %622 = vrot.lane.b32.xlu0 %v393, 119
        %v623 = vpop.permute.xlu0 %622
        %624 = vrot.lane.b32.xlu0 %v382, 119
        %v625 = vpop.permute.xlu0 %624
        %626 = vrot.lane.b32.xlu0 %v394, 119
        %v627 = vpop.permute.xlu0 %626
        %628 = vrot.lane.b32.xlu0 %v383, 119
        %v629 = vpop.permute.xlu0 %628
        %630 = vrot.lane.b32.xlu0 %v395, 119
        %v631 = vpop.permute.xlu0 %630
        %632 = vrot.lane.b32.xlu0 %v384, 119
        %v633 = vpop.permute.xlu0 %632
        %634 = vrot.lane.b32.xlu0 %v396, 119
        %v635 = vpop.permute.xlu0 %634
        %636 = vrot.lane.b32.xlu0 %v385, 119
        %v637 = vpop.permute.xlu0 %636
        %vm638 = vcmp.lt.s32.totalorder %v420, 119
        %v639 = vsel %vm638, %v631, %v635
        %v640 = vsel %vm638, %v633, %v637
        %v641 = vsel %vm638, %v627, %v631
        %v642 = vsel %vm638, %v629, %v633
        %v643 = vsel %vm638, %v623, %v627
        %v644 = vsel %vm638, %v625, %v629
        %v645 = vsel %vm638, %v619, %v623
        %v646 = vsel %vm638, %v621, %v625
        %v647 = vsel %vm638, %v635, %v619
        %v648 = vsel %vm638, %v637, %v621
        %v659 = vrot.slane %v461, 4
        %v660 = vrot.slane %v459, 4
        %v661 = vrot.slane %v457, 4
        %v662 = vrot.slane %v455, 4
        %v663 = vrot.slane %v453, 4
        %v664 = vrot.slane %v462, 4
        %v665 = vsel %vm391, %v659, %v664
        %v666 = vrot.slane %v460, 4
        %v667 = vsel %vm391, %v660, %v666
        %v668 = vrot.slane %v458, 4
        %v669 = vsel %vm391, %v661, %v668
        %v670 = vrot.slane %v456, 4
        %v671 = vsel %vm391, %v662, %v670
        %v672 = vrot.slane %v454, 4
        %v673 = vsel %vm391, %v663, %v672
        %v694 = vrot.slane %v523, 4
        %v695 = vrot.slane %v521, 4
        %v696 = vrot.slane %v519, 4
        %v697 = vrot.slane %v517, 4
        %v698 = vrot.slane %v515, 4
        %v699 = vrot.slane %v524, 4
        %v700 = vsel %vm391, %v694, %v699
        %v701 = vrot.slane %v522, 4
        %v702 = vsel %vm391, %v695, %v701
        %v703 = vrot.slane %v520, 4
        %v704 = vsel %vm391, %v696, %v703
        %v705 = vrot.slane %v518, 4
        %v706 = vsel %vm391, %v697, %v705
        %v707 = vrot.slane %v516, 4
        %v708 = vsel %vm391, %v698, %v707
        %v729 = vrot.slane %v552, 4
        %v730 = vrot.slane %v550, 4
        %v731 = vrot.slane %v548, 4
        %v732 = vrot.slane %v546, 4
        %v733 = vrot.slane %v554, 4
        %v734 = vrot.slane %v553, 4
        %v735 = vsel %vm391, %v729, %v734
        %v736 = vrot.slane %v551, 4
        %v737 = vsel %vm391, %v730, %v736
        %v738 = vrot.slane %v549, 4
        %v739 = vsel %vm391, %v731, %v738
        %v740 = vrot.slane %v547, 4
        %v741 = vsel %vm391, %v732, %v740
        %v742 = vrot.slane %v555, 4
        %v743 = vsel %vm391, %v733, %v742
        %v764 = vrot.slane %v614, 4
        %v765 = vrot.slane %v612, 4
        %v766 = vrot.slane %v610, 4
        %v767 = vrot.slane %v608, 4
        %v768 = vrot.slane %v616, 4
        %v769 = vrot.slane %v615, 4
        %v770 = vsel %vm391, %v764, %v769
        %v771 = vrot.slane %v613, 4
        %v772 = vsel %vm391, %v765, %v771
        %v773 = vrot.slane %v611, 4
        %v774 = vsel %vm391, %v766, %v773
        %v775 = vrot.slane %v609, 4
        %v776 = vsel %vm391, %v767, %v775
        %v777 = vrot.slane %v617, 4
        %v778 = vsel %vm391, %v768, %v777
        %v790 = vlaneseq
        %v791 = vshrl.u32 %v790, 7
        %v792 = vsub.s32 0, %v791
        %v793 = vrot.slane %v397, %v792
        %v794 = vlaneseq
        %v795 = vshrl.u32 %v794, 7
        %v796 = vsub.s32 1, %v795
        %v797 = vrot.slane %v397, %v796
        %v798 = vlaneseq
        %v799 = vshrl.u32 %v798, 7
        %v800 = vsub.s32 2, %v799
        %v801 = vrot.slane %v397, %v800
        %v802 = vlaneseq
        %v803 = vshrl.u32 %v802, 7
        %v804 = vsub.s32 3, %v803
        %v805 = vrot.slane %v397, %v804
        %v806 = vlaneseq
        %v807 = vshrl.u32 %v806, 7
        %v808 = vsub.s32 4, %v807
        %v809 = vrot.slane %v397, %v808
        %v815 = vsel %vm391, %v431, %v659
        %v816 = vsel %vm391, %v429, %v660
        %v817 = vsel %vm391, %v427, %v661
        %v818 = vsel %vm391, %v425, %v662
        %v819 = vsel %vm391, %v423, %v663
        %v820 = vsel %vm391, %v493, %v694
        %v821 = vsel %vm391, %v491, %v695
        %v822 = vsel %vm391, %v489, %v696
        %v823 = vsel %vm391, %v487, %v697
        %v824 = vsel %vm391, %v485, %v698
        %v825 = vsel %vm391, %v381, %v729
        %v826 = vsel %vm391, %v382, %v730
        %v827 = vsel %vm391, %v383, %v731
        %v828 = vsel %vm391, %v384, %v732
        %v829 = vsel %vm391, %v385, %v733
        %v830 = vsel %vm391, %v584, %v764
        %v831 = vsel %vm391, %v582, %v765
        %v832 = vsel %vm391, %v580, %v766
        %v833 = vsel %vm391, %v578, %v767
        %v834 = vsel %vm391, %v586, %v768
        %v835 = vsel %vm391, %v646, %v793
        %v836 = vsel %vm391, %v644, %v797
        %v837 = vsel %vm391, %v642, %v801
        %v838 = vsel %vm391, %v640, %v805
        %v839 = vsel %vm391, %v648, %v809
        %vm840 = vcmask 891904
        %v842 = vsel %vm840, %v398, 0
        %vm844 = vcmask 1044480
        %v846 = vsel %vm844, %v835, 0
        %v849 = vsel %vm844, %v836, 0
        %v852 = vsel %vm844, %v837, 0
        %v855 = vsel %vm844, %v838, 0
        %v858 = vsel %vm844, %v839, 0
        %860 = vmatprep.subr.mxu0 0.0
        %861 = vmatpush1.msra.mxu0 0.0
        %862 = vmatprep.subr.mxu0 0.0
        %863 = vmatpush1.msra.mxu0 0.0
        %864 = vmatprep.subr.mxu0 %v849
        %865 = vmatpush1.msra.mxu0 %v846
        %866 = vmatprep.subr.mxu0 %v643
        %867 = vmatpush1.msra.mxu0 %v645
        %868 = vmatprep.subr.mxu0 %v772
        %869 = vmatpush1.msra.mxu0 %v770
        %870 = vmatprep.subr.mxu0 %v831
        %871 = vmatpush1.msra.mxu0 %v830
        %872 = vmatprep.subr.mxu0 %v581
        %873 = vmatpush1.msra.mxu0 %v583
        %874 = vmatprep.subr.mxu0 %v737
        %875 = vmatpush1.msra.mxu0 %v735
        %876 = vmatprep.subr.mxu0 %v826
        %877 = vmatpush1.msra.mxu0 %v825
        %878 = vmatprep.subr.mxu0 %v393
        %879 = vmatpush1.msra.mxu0 %v392
        %880 = vmatprep.subr.mxu0 %v702
        %881 = vmatpush1.msra.mxu0 %v700
        %882 = vmatprep.subr.mxu0 %v821
        %883 = vmatpush1.msra.mxu0 %v820
        %884 = vmatprep.subr.mxu0 %v490
        %885 = vmatpush1.msra.mxu0 %v492
        %886 = vmatprep.subr.mxu0 %v667
        %887 = vmatpush1.msra.mxu0 %v665
        %888 = vmatprep.subr.mxu0 %v816
        %889 = vmatpush1.msra.mxu0 %v815
        %890 = vmatprep.subr.mxu0 %v428
        %891 = vmatpush1.msra.mxu0 %v430
        %892 = vmatprep.subr.mxu0 0.0
        %893 = vmatpush2.msra.mxu0 0.0
        %894 = vmatprep.subr.mxu0 0.0
        %895 = vmatpush2.msra.mxu0 0.0
        %896 = vmatprep.subr.mxu0 0.0
        %897 = vmatpush2.msra.mxu0 0.0
        %898 = vmatprep.subr.mxu0 0.0
        %899 = vmatpush2.msra.mxu0 0.0
        %900 = vmatprep.subr.mxu0 0.0
        %901 = vmatpush2.msra.mxu0 0.0
        %902 = vmatprep.subr.mxu0 0.0
        %903 = vmatpush2.msra.mxu0 0.0
        %904 = vmatprep.subr.mxu0 0.0
        %905 = vmatpush2.msra.mxu0 0.0
        %906 = vmatprep.subr.mxu0 0.0
        %907 = vmatpush2.msra.mxu0 0.0
        %908 = vmatprep.subr.mxu0 0.0
        %909 = vmatpush2.msra.mxu0 0.0
        %910 = vmatprep.subr.mxu0 0.0
        %911 = vmatpush2.msra.mxu0 0.0
        %912 = vmatprep.subr.mxu0 0.0
        %913 = vmatpush2.msra.mxu0 0.0
        %914 = vmatprep.subr.mxu0 0.0
        %915 = vmatpush2.msra.mxu0 0.0
        %916 = vmatprep.subr.mxu0 0.0
        %917 = vmatpush2.msra.mxu0 0.0
        %918 = vmatprep.subr.mxu0 0.0
        %919 = vmatpush2.msra.mxu0 0.0
        %920 = vmatprep.subr.mxu0 0.0
        %921 = vmatpush2.msra.mxu0 0.0
        %922 = vmatprep.subr.mxu0 0.0
        %923 = vmatpush2.msra.mxu0 0.0
        %924 = vmatprep.mubr.f32.mxu0 0.0
        %925 = vmatmul.mubr.f32.gmra.mxu0 %v842
        %v926 = vpop.f32.mrf.mxu0
        %v927 = vadd.f32 0.0, %v926
        %v928 = vpop.f32.mrf.mxu0
        %v929 = vadd.f32 0.0, %v928
        %930 = vdwg.mxu0
        %931 = vmatprep.subr.mxu0 0.0
        %932 = vmatpush1.msra.mxu0 0.0
        %933 = vmatprep.subr.mxu0 0.0
        %934 = vmatpush1.msra.mxu0 0.0
        %935 = vmatprep.subr.mxu0 %v855
        %936 = vmatpush1.msra.mxu0 %v852
        %937 = vmatprep.subr.mxu0 %v639
        %938 = vmatpush1.msra.mxu0 %v641
        %939 = vmatprep.subr.mxu0 %v776
        %940 = vmatpush1.msra.mxu0 %v774
        %941 = vmatprep.subr.mxu0 %v833
        %942 = vmatpush1.msra.mxu0 %v832
        %943 = vmatprep.subr.mxu0 %v577
        %944 = vmatpush1.msra.mxu0 %v579
        %945 = vmatprep.subr.mxu0 %v741
        %946 = vmatpush1.msra.mxu0 %v739
        %947 = vmatprep.subr.mxu0 %v828
        %948 = vmatpush1.msra.mxu0 %v827
        %949 = vmatprep.subr.mxu0 %v395
        %950 = vmatpush1.msra.mxu0 %v394
        %951 = vmatprep.subr.mxu0 %v706
        %952 = vmatpush1.msra.mxu0 %v704
        %953 = vmatprep.subr.mxu0 %v823
        %954 = vmatpush1.msra.mxu0 %v822
        %955 = vmatprep.subr.mxu0 %v486
        %956 = vmatpush1.msra.mxu0 %v488
        %957 = vmatprep.subr.mxu0 %v671
        %958 = vmatpush1.msra.mxu0 %v669
        %959 = vmatprep.subr.mxu0 %v818
        %960 = vmatpush1.msra.mxu0 %v817
        %961 = vmatprep.subr.mxu0 %v424
        %962 = vmatpush1.msra.mxu0 %v426
        %963 = vmatprep.subr.mxu0 0.0
        %964 = vmatpush2.msra.mxu0 0.0
        %965 = vmatprep.subr.mxu0 0.0
        %966 = vmatpush2.msra.mxu0 0.0
        %967 = vmatprep.subr.mxu0 0.0
        %968 = vmatpush2.msra.mxu0 0.0
        %969 = vmatprep.subr.mxu0 0.0
        %970 = vmatpush2.msra.mxu0 0.0
        %971 = vmatprep.subr.mxu0 0.0
        %972 = vmatpush2.msra.mxu0 0.0
        %973 = vmatprep.subr.mxu0 0.0
        %974 = vmatpush2.msra.mxu0 0.0
        %975 = vmatprep.subr.mxu0 0.0
        %976 = vmatpush2.msra.mxu0 0.0
        %977 = vmatprep.subr.mxu0 0.0
        %978 = vmatpush2.msra.mxu0 0.0
        %979 = vmatprep.subr.mxu0 0.0
        %980 = vmatpush2.msra.mxu0 0.0
        %981 = vmatprep.subr.mxu0 0.0
        %982 = vmatpush2.msra.mxu0 0.0
        %983 = vmatprep.subr.mxu0 0.0
        %984 = vmatpush2.msra.mxu0 0.0
        %985 = vmatprep.subr.mxu0 0.0
        %986 = vmatpush2.msra.mxu0 0.0
        %987 = vmatprep.subr.mxu0 0.0
        %988 = vmatpush2.msra.mxu0 0.0
        %989 = vmatprep.subr.mxu0 0.0
        %990 = vmatpush2.msra.mxu0 0.0
        %991 = vmatprep.subr.mxu0 0.0
        %992 = vmatpush2.msra.mxu0 0.0
        %993 = vmatprep.subr.mxu0 0.0
        %994 = vmatpush2.msra.mxu0 0.0
        %995 = vmatprep.mubr.f32.mxu0 0.0
        %996 = vmatmul.mubr.f32.gmra.mxu0 %v842
        %v997 = vpop.f32.mrf.mxu0
        %v998 = vadd.f32 0.0, %v997
        %v999 = vpop.f32.mrf.mxu0
        %v1000 = vadd.f32 0.0, %v999
        %1001 = vdwg.mxu0
        %1002 = vmatprep.subr.mxu0 0.0
        %1003 = vmatpush1.msra.mxu0 0.0
        %1004 = vmatprep.subr.mxu0 0.0
        %1005 = vmatpush1.msra.mxu0 0.0
        %1006 = vmatprep.subr.mxu0 0.0
        %1007 = vmatpush1.msra.mxu0 %v858
        %1008 = vmatprep.subr.mxu0 0.0
        %1009 = vmatpush1.msra.mxu0 %v647
        %1010 = vmatprep.subr.mxu0 0.0
        %1011 = vmatpush1.msra.mxu0 %v778
        %1012 = vmatprep.subr.mxu0 0.0
        %1013 = vmatpush1.msra.mxu0 %v834
        %1014 = vmatprep.subr.mxu0 0.0
        %1015 = vmatpush1.msra.mxu0 %v585
        %1016 = vmatprep.subr.mxu0 0.0
        %1017 = vmatpush1.msra.mxu0 %v743
        %1018 = vmatprep.subr.mxu0 0.0
        %1019 = vmatpush1.msra.mxu0 %v829
        %1020 = vmatprep.subr.mxu0 0.0
        %1021 = vmatpush1.msra.mxu0 %v396
        %1022 = vmatprep.subr.mxu0 0.0
        %1023 = vmatpush1.msra.mxu0 %v708
        %1024 = vmatprep.subr.mxu0 0.0
        %1025 = vmatpush1.msra.mxu0 %v824
        %1026 = vmatprep.subr.mxu0 0.0
        %1027 = vmatpush1.msra.mxu0 %v484
        %1028 = vmatprep.subr.mxu0 0.0
        %1029 = vmatpush1.msra.mxu0 %v673
        %1030 = vmatprep.subr.mxu0 0.0
        %1031 = vmatpush1.msra.mxu0 %v819
        %1032 = vmatprep.subr.mxu0 0.0
        %1033 = vmatpush1.msra.mxu0 %v422
        %1034 = vmatprep.subr.mxu0 0.0
        %1035 = vmatpush2.msra.mxu0 0.0
        %1036 = vmatprep.subr.mxu0 0.0
        %1037 = vmatpush2.msra.mxu0 0.0
        %1038 = vmatprep.subr.mxu0 0.0
        %1039 = vmatpush2.msra.mxu0 0.0
        %1040 = vmatprep.subr.mxu0 0.0
        %1041 = vmatpush2.msra.mxu0 0.0
        %1042 = vmatprep.subr.mxu0 0.0
        %1043 = vmatpush2.msra.mxu0 0.0
        %1044 = vmatprep.subr.mxu0 0.0
        %1045 = vmatpush2.msra.mxu0 0.0
        %1046 = vmatprep.subr.mxu0 0.0
        %1047 = vmatpush2.msra.mxu0 0.0
        %1048 = vmatprep.subr.mxu0 0.0
        %1049 = vmatpush2.msra.mxu0 0.0
        %1050 = vmatprep.subr.mxu0 0.0
        %1051 = vmatpush2.msra.mxu0 0.0
        %1052 = vmatprep.subr.mxu0 0.0
        %1053 = vmatpush2.msra.mxu0 0.0
        %1054 = vmatprep.subr.mxu0 0.0
        %1055 = vmatpush2.msra.mxu0 0.0
        %1056 = vmatprep.subr.mxu0 0.0
        %1057 = vmatpush2.msra.mxu0 0.0
        %1058 = vmatprep.subr.mxu0 0.0
        %1059 = vmatpush2.msra.mxu0 0.0
        %1060 = vmatprep.subr.mxu0 0.0
        %1061 = vmatpush2.msra.mxu0 0.0
        %1062 = vmatprep.subr.mxu0 0.0
        %1063 = vmatpush2.msra.mxu0 0.0
        %1064 = vmatprep.subr.mxu0 0.0
        %1065 = vmatpush2.msra.mxu0 0.0
        %1066 = vmatprep.mubr.f32.mxu0 0.0
        %1067 = vmatmul.mubr.f32.gmra.mxu0 %v842
        %v1068 = vpop.f32.mrf.mxu0
        %v1069 = vadd.f32 0.0, %v1068
        %v1070 = vpop.f32.mrf.mxu0
        %1071 = vdwg.mxu0
        %v1072 = vmax.f32 %v927, 0.0
        %v1073 = vmax.f32 %v929, 0.0
        %v1074 = vmax.f32 %v998, 0.0
        %v1075 = vmax.f32 %v1000, 0.0
        %v1076 = vmax.f32 %v1069, 0.0
        %v1077 = vmul.f32 %v1072, %v793
        %v1078 = vmul.f32 %v1073, %v797
        %v1079 = vmul.f32 %v1074, %v801
        %v1080 = vmul.f32 %v1075, %v805
        %v1081 = vmul.f32 %v1076, %v809
        %v1082 = vld [vmem:[%s4] sm:$0xf]
        %1083 = vrot.lane.b32.xlu0 %v1077, 9
        %v1084 = vpop.permute.xlu0 %1083
        %1085 = vrot.lane.b32.xlu0 %v1078, 9
        %v1086 = vpop.permute.xlu0 %1085
        %1087 = vrot.lane.b32.xlu0 %v1079, 9
        %v1088 = vpop.permute.xlu0 %1087
        %1089 = vrot.lane.b32.xlu0 %v1080, 9
        %v1090 = vpop.permute.xlu0 %1089
        %1091 = vrot.lane.b32.xlu0 %v1081, 9
        %v1092 = vpop.permute.xlu0 %1091
        %v1093 = vsel %vm421, %v1090, %v1092
        %v1094 = vsel %vm421, %v1088, %v1090
        %v1095 = vsel %vm421, %v1086, %v1088
        %v1096 = vsel %vm421, %v1084, %v1086
        %v1097 = vsel %vm421, %v1092, %v1084
        %1098 = vrot.lane.b32.xlu0 %v1077, 8
        %v1099 = vpop.permute.xlu0 %1098
        %1100 = vrot.lane.b32.xlu0 %v1078, 8
        %v1101 = vpop.permute.xlu0 %1100
        %1102 = vrot.lane.b32.xlu0 %v1079, 8
        %v1103 = vpop.permute.xlu0 %1102
        %1104 = vrot.lane.b32.xlu0 %v1080, 8
        %v1105 = vpop.permute.xlu0 %1104
        %1106 = vrot.lane.b32.xlu0 %v1081, 8
        %v1107 = vpop.permute.xlu0 %1106
        %v1108 = vsel %vm452, %v1105, %v1107
        %v1109 = vsel %vm452, %v1103, %v1105
        %v1110 = vsel %vm452, %v1101, %v1103
        %v1111 = vsel %vm452, %v1099, %v1101
        %v1112 = vsel %vm452, %v1107, %v1099
        %1113 = vrot.lane.b32.xlu0 %v1077, 7
        %v1114 = vpop.permute.xlu0 %1113
        %1115 = vrot.lane.b32.xlu0 %v1078, 7
        %v1116 = vpop.permute.xlu0 %1115
        %1117 = vrot.lane.b32.xlu0 %v1079, 7
        %v1118 = vpop.permute.xlu0 %1117
        %1119 = vrot.lane.b32.xlu0 %v1080, 7
        %v1120 = vpop.permute.xlu0 %1119
        %1121 = vrot.lane.b32.xlu0 %v1081, 7
        %v1122 = vpop.permute.xlu0 %1121
        %v1123 = vsel %vm483, %v1120, %v1122
        %v1124 = vsel %vm483, %v1118, %v1120
        %v1125 = vsel %vm483, %v1116, %v1118
        %v1126 = vsel %vm483, %v1114, %v1116
        %v1127 = vsel %vm483, %v1122, %v1114
        %1128 = vrot.lane.b32.xlu0 %v1077, 1
        %v1129 = vpop.permute.xlu0 %1128
        %1130 = vrot.lane.b32.xlu0 %v1078, 1
        %v1131 = vpop.permute.xlu0 %1130
        %1132 = vrot.lane.b32.xlu0 %v1079, 1
        %v1133 = vpop.permute.xlu0 %1132
        %1134 = vrot.lane.b32.xlu0 %v1080, 1
        %v1135 = vpop.permute.xlu0 %1134
        %1136 = vrot.lane.b32.xlu0 %v1081, 1
        %v1137 = vpop.permute.xlu0 %1136
        %v1138 = vsel %vm514, %v1135, %v1137
        %v1139 = vsel %vm514, %v1133, %v1135
        %v1140 = vsel %vm514, %v1131, %v1133
        %v1141 = vsel %vm514, %v1129, %v1131
        %v1142 = vsel %vm514, %v1137, %v1129
        %1143 = vrot.lane.b32.xlu0 %v1077, 127
        %v1144 = vpop.permute.xlu0 %1143
        %1145 = vrot.lane.b32.xlu0 %v1078, 127
        %v1146 = vpop.permute.xlu0 %1145
        %1147 = vrot.lane.b32.xlu0 %v1079, 127
        %v1148 = vpop.permute.xlu0 %1147
        %1149 = vrot.lane.b32.xlu0 %v1080, 127
        %v1150 = vpop.permute.xlu0 %1149
        %1151 = vrot.lane.b32.xlu0 %v1081, 127
        %v1152 = vpop.permute.xlu0 %1151
        %v1153 = vsel %vm545, %v1150, %v1152
        %v1154 = vsel %vm545, %v1148, %v1150
        %v1155 = vsel %vm545, %v1146, %v1148
        %v1156 = vsel %vm545, %v1144, %v1146
        %v1157 = vsel %vm545, %v1152, %v1144
        %1158 = vrot.lane.b32.xlu0 %v1077, 121
        %v1159 = vpop.permute.xlu0 %1158
        %1160 = vrot.lane.b32.xlu0 %v1078, 121
        %v1161 = vpop.permute.xlu0 %1160
        %1162 = vrot.lane.b32.xlu0 %v1079, 121
        %v1163 = vpop.permute.xlu0 %1162
        %1164 = vrot.lane.b32.xlu0 %v1080, 121
        %v1165 = vpop.permute.xlu0 %1164
        %1166 = vrot.lane.b32.xlu0 %v1081, 121
        %v1167 = vpop.permute.xlu0 %1166
        %v1168 = vsel %vm576, %v1165, %v1167
        %v1169 = vsel %vm576, %v1163, %v1165
        %v1170 = vsel %vm576, %v1161, %v1163
        %v1171 = vsel %vm576, %v1159, %v1161
        %v1172 = vsel %vm576, %v1167, %v1159
        %1173 = vrot.lane.b32.xlu0 %v1077, 120
        %v1174 = vpop.permute.xlu0 %1173
        %1175 = vrot.lane.b32.xlu0 %v1078, 120
        %v1176 = vpop.permute.xlu0 %1175
        %1177 = vrot.lane.b32.xlu0 %v1079, 120
        %v1178 = vpop.permute.xlu0 %1177
        %1179 = vrot.lane.b32.xlu0 %v1080, 120
        %v1180 = vpop.permute.xlu0 %1179
        %1181 = vrot.lane.b32.xlu0 %v1081, 120
        %v1182 = vpop.permute.xlu0 %1181
        %v1183 = vsel %vm607, %v1180, %v1182
        %v1184 = vsel %vm607, %v1178, %v1180
        %v1185 = vsel %vm607, %v1176, %v1178
        %v1186 = vsel %vm607, %v1174, %v1176
        %v1187 = vsel %vm607, %v1182, %v1174
        %1188 = vrot.lane.b32.xlu0 %v1077, 119
        %v1189 = vpop.permute.xlu0 %1188
        %1190 = vrot.lane.b32.xlu0 %v1078, 119
        %v1191 = vpop.permute.xlu0 %1190
        %1192 = vrot.lane.b32.xlu0 %v1079, 119
        %v1193 = vpop.permute.xlu0 %1192
        %1194 = vrot.lane.b32.xlu0 %v1080, 119
        %v1195 = vpop.permute.xlu0 %1194
        %1196 = vrot.lane.b32.xlu0 %v1081, 119
        %v1197 = vpop.permute.xlu0 %1196
        %v1198 = vsel %vm638, %v1195, %v1197
        %v1199 = vsel %vm638, %v1193, %v1195
        %v1200 = vsel %vm638, %v1191, %v1193
        %v1201 = vsel %vm638, %v1189, %v1191
        %v1202 = vsel %vm638, %v1197, %v1189
        %v1208 = vrot.slane %v1112, 4
        %v1209 = vrot.slane %v1111, 4
        %v1210 = vrot.slane %v1110, 4
        %v1211 = vrot.slane %v1109, 4
        %v1212 = vrot.slane %v1108, 4
        %v1223 = vrot.slane %v1142, 4
        %v1224 = vrot.slane %v1141, 4
        %v1225 = vrot.slane %v1140, 4
        %v1226 = vrot.slane %v1139, 4
        %v1227 = vrot.slane %v1138, 4
        %v1238 = vrot.slane %v1156, 4
        %v1239 = vrot.slane %v1155, 4
        %v1240 = vrot.slane %v1154, 4
        %v1241 = vrot.slane %v1153, 4
        %v1242 = vrot.slane %v1157, 4
        %v1253 = vrot.slane %v1186, 4
        %v1254 = vrot.slane %v1185, 4
        %v1255 = vrot.slane %v1184, 4
        %v1256 = vrot.slane %v1183, 4
        %v1257 = vrot.slane %v1187, 4
        %v1263 = vsel %vm391, %v1097, %v1208
        %v1264 = vsel %vm391, %v1096, %v1209
        %v1265 = vsel %vm391, %v1095, %v1210
        %v1266 = vsel %vm391, %v1094, %v1211
        %v1267 = vsel %vm391, %v1093, %v1212
        %v1268 = vsel %vm391, %v1127, %v1223
        %v1269 = vsel %vm391, %v1126, %v1224
        %v1270 = vsel %vm391, %v1125, %v1225
        %v1271 = vsel %vm391, %v1124, %v1226
        %v1272 = vsel %vm391, %v1123, %v1227
        %v1273 = vsel %vm391, %v1077, %v1238
        %v1274 = vsel %vm391, %v1078, %v1239
        %v1275 = vsel %vm391, %v1079, %v1240
        %v1276 = vsel %vm391, %v1080, %v1241
        %v1277 = vsel %vm391, %v1081, %v1242
        %v1278 = vsel %vm391, %v1171, %v1253
        %v1279 = vsel %vm391, %v1170, %v1254
        %v1280 = vsel %vm391, %v1169, %v1255
        %v1281 = vsel %vm391, %v1168, %v1256
        %v1282 = vsel %vm391, %v1172, %v1257
        %v1283 = vsel %vm391, %v1201, %v793
        %v1284 = vsel %vm391, %v1200, %v797
        %v1285 = vsel %vm391, %v1199, %v801
        %v1286 = vsel %vm391, %v1198, %v805
        %v1287 = vsel %vm391, %v1202, %v809
        %vm1288 = vcmask 302080
        %v1290 = vsel %vm1288, %v1082, 0
        %v1293 = vsel %vm844, %v1283, 0
        %v1296 = vsel %vm844, %v1284, 0
        %v1299 = vsel %vm844, %v1285, 0
        %v1302 = vsel %vm844, %v1286, 0
        %v1305 = vsel %vm844, %v1287, 0
        %1307 = vmatprep.subr.mxu0 0.0
        %1308 = vmatpush1.msra.mxu0 0.0
        %1309 = vmatprep.subr.mxu0 0.0
        %1310 = vmatpush1.msra.mxu0 0.0
        %1311 = vmatprep.subr.mxu0 0.0
        %1312 = vmatpush1.msra.mxu0 0.0
        %1313 = vmatprep.subr.mxu0 0.0
        %1314 = vmatpush1.msra.mxu0 0.0
        %1315 = vmatprep.subr.mxu0 0.0
        %1316 = vmatpush1.msra.mxu0 0.0
        %1317 = vmatprep.subr.mxu0 0.0
        %1318 = vmatpush1.msra.mxu0 0.0
        %1319 = vmatprep.subr.mxu0 0.0
        %1320 = vmatpush1.msra.mxu0 0.0
        %1321 = vmatprep.subr.mxu0 0.0
        %1322 = vmatpush1.msra.mxu0 0.0
        %1323 = vmatprep.subr.mxu0 0.0
        %1324 = vmatpush1.msra.mxu0 0.0
        %1325 = vmatprep.subr.mxu0 0.0
        %1326 = vmatpush1.msra.mxu0 0.0
        %1327 = vmatprep.subr.mxu0 0.0
        %1328 = vmatpush1.msra.mxu0 0.0
        %1329 = vmatprep.subr.mxu0 %v1296
        %1330 = vmatpush1.msra.mxu0 %v1293
        %1331 = vmatprep.subr.mxu0 %v1279
        %1332 = vmatpush1.msra.mxu0 %v1278
        %1333 = vmatprep.subr.mxu0 %v1274
        %1334 = vmatpush1.msra.mxu0 %v1273
        %1335 = vmatprep.subr.mxu0 %v1269
        %1336 = vmatpush1.msra.mxu0 %v1268
        %1337 = vmatprep.subr.mxu0 %v1264
        %1338 = vmatpush1.msra.mxu0 %v1263
        %1339 = vmatprep.subr.mxu0 0.0
        %1340 = vmatpush2.msra.mxu0 0.0
        %1341 = vmatprep.subr.mxu0 0.0
        %1342 = vmatpush2.msra.mxu0 0.0
        %1343 = vmatprep.subr.mxu0 0.0
        %1344 = vmatpush2.msra.mxu0 0.0
        %1345 = vmatprep.subr.mxu0 0.0
        %1346 = vmatpush2.msra.mxu0 0.0
        %1347 = vmatprep.subr.mxu0 0.0
        %1348 = vmatpush2.msra.mxu0 0.0
        %1349 = vmatprep.subr.mxu0 0.0
        %1350 = vmatpush2.msra.mxu0 0.0
        %1351 = vmatprep.subr.mxu0 0.0
        %1352 = vmatpush2.msra.mxu0 0.0
        %1353 = vmatprep.subr.mxu0 0.0
        %1354 = vmatpush2.msra.mxu0 0.0
        %1355 = vmatprep.subr.mxu0 0.0
        %1356 = vmatpush2.msra.mxu0 0.0
        %1357 = vmatprep.subr.mxu0 0.0
        %1358 = vmatpush2.msra.mxu0 0.0
        %1359 = vmatprep.subr.mxu0 0.0
        %1360 = vmatpush2.msra.mxu0 0.0
        %1361 = vmatprep.subr.mxu0 0.0
        %1362 = vmatpush2.msra.mxu0 0.0
        %1363 = vmatprep.subr.mxu0 0.0
        %1364 = vmatpush2.msra.mxu0 0.0
        %1365 = vmatprep.subr.mxu0 0.0
        %1366 = vmatpush2.msra.mxu0 0.0
        %1367 = vmatprep.subr.mxu0 0.0
        %1368 = vmatpush2.msra.mxu0 0.0
        %1369 = vmatprep.subr.mxu0 0.0
        %1370 = vmatpush2.msra.mxu0 0.0
        %1371 = vmatprep.mubr.f32.mxu0 0.0
        %1372 = vmatmul.mubr.f32.gmra.mxu0 %v1290
        %v1373 = vpop.f32.mrf.mxu0
        %v1374 = vadd.f32 0.0, %v1373
        %v1375 = vpop.f32.mrf.mxu0
        %v1376 = vadd.f32 0.0, %v1375
        %1377 = vdwg.mxu0
        %1378 = vmatprep.subr.mxu0 0.0
        %1379 = vmatpush1.msra.mxu0 0.0
        %1380 = vmatprep.subr.mxu0 0.0
        %1381 = vmatpush1.msra.mxu0 0.0
        %1382 = vmatprep.subr.mxu0 0.0
        %1383 = vmatpush1.msra.mxu0 0.0
        %1384 = vmatprep.subr.mxu0 0.0
        %1385 = vmatpush1.msra.mxu0 0.0
        %1386 = vmatprep.subr.mxu0 0.0
        %1387 = vmatpush1.msra.mxu0 0.0
        %1388 = vmatprep.subr.mxu0 0.0
        %1389 = vmatpush1.msra.mxu0 0.0
        %1390 = vmatprep.subr.mxu0 0.0
        %1391 = vmatpush1.msra.mxu0 0.0
        %1392 = vmatprep.subr.mxu0 0.0
        %1393 = vmatpush1.msra.mxu0 0.0
        %1394 = vmatprep.subr.mxu0 0.0
        %1395 = vmatpush1.msra.mxu0 0.0
        %1396 = vmatprep.subr.mxu0 0.0
        %1397 = vmatpush1.msra.mxu0 0.0
        %1398 = vmatprep.subr.mxu0 0.0
        %1399 = vmatpush1.msra.mxu0 0.0
        %1400 = vmatprep.subr.mxu0 %v1302
        %1401 = vmatpush1.msra.mxu0 %v1299
        %1402 = vmatprep.subr.mxu0 %v1281
        %1403 = vmatpush1.msra.mxu0 %v1280
        %1404 = vmatprep.subr.mxu0 %v1276
        %1405 = vmatpush1.msra.mxu0 %v1275
        %1406 = vmatprep.subr.mxu0 %v1271
        %1407 = vmatpush1.msra.mxu0 %v1270
        %1408 = vmatprep.subr.mxu0 %v1266
        %1409 = vmatpush1.msra.mxu0 %v1265
        %1410 = vmatprep.subr.mxu0 0.0
        %1411 = vmatpush2.msra.mxu0 0.0
        %1412 = vmatprep.subr.mxu0 0.0
        %1413 = vmatpush2.msra.mxu0 0.0
        %1414 = vmatprep.subr.mxu0 0.0
        %1415 = vmatpush2.msra.mxu0 0.0
        %1416 = vmatprep.subr.mxu0 0.0
        %1417 = vmatpush2.msra.mxu0 0.0
        %1418 = vmatprep.subr.mxu0 0.0
        %1419 = vmatpush2.msra.mxu0 0.0
        %1420 = vmatprep.subr.mxu0 0.0
        %1421 = vmatpush2.msra.mxu0 0.0
        %1422 = vmatprep.subr.mxu0 0.0
        %1423 = vmatpush2.msra.mxu0 0.0
        %1424 = vmatprep.subr.mxu0 0.0
        %1425 = vmatpush2.msra.mxu0 0.0
        %1426 = vmatprep.subr.mxu0 0.0
        %1427 = vmatpush2.msra.mxu0 0.0
        %1428 = vmatprep.subr.mxu0 0.0
        %1429 = vmatpush2.msra.mxu0 0.0
        %1430 = vmatprep.subr.mxu0 0.0
        %1431 = vmatpush2.msra.mxu0 0.0
        %1432 = vmatprep.subr.mxu0 0.0
        %1433 = vmatpush2.msra.mxu0 0.0
        %1434 = vmatprep.subr.mxu0 0.0
        %1435 = vmatpush2.msra.mxu0 0.0
        %1436 = vmatprep.subr.mxu0 0.0
        %1437 = vmatpush2.msra.mxu0 0.0
        %1438 = vmatprep.subr.mxu0 0.0
        %1439 = vmatpush2.msra.mxu0 0.0
        %1440 = vmatprep.subr.mxu0 0.0
        %1441 = vmatpush2.msra.mxu0 0.0
        %1442 = vmatprep.mubr.f32.mxu0 0.0
        %1443 = vmatmul.mubr.f32.gmra.mxu0 %v1290
        %v1444 = vpop.f32.mrf.mxu0
        %v1445 = vadd.f32 0.0, %v1444
        %v1446 = vpop.f32.mrf.mxu0
        %v1447 = vadd.f32 0.0, %v1446
        %1448 = vdwg.mxu0
        %1449 = vmatprep.subr.mxu0 0.0
        %1450 = vmatpush1.msra.mxu0 0.0
        %1451 = vmatprep.subr.mxu0 0.0
        %1452 = vmatpush1.msra.mxu0 0.0
        %1453 = vmatprep.subr.mxu0 0.0
        %1454 = vmatpush1.msra.mxu0 0.0
        %1455 = vmatprep.subr.mxu0 0.0
        %1456 = vmatpush1.msra.mxu0 0.0
        %1457 = vmatprep.subr.mxu0 0.0
        %1458 = vmatpush1.msra.mxu0 0.0
        %1459 = vmatprep.subr.mxu0 0.0
        %1460 = vmatpush1.msra.mxu0 0.0
        %1461 = vmatprep.subr.mxu0 0.0
        %1462 = vmatpush1.msra.mxu0 0.0
        %1463 = vmatprep.subr.mxu0 0.0
        %1464 = vmatpush1.msra.mxu0 0.0
        %1465 = vmatprep.subr.mxu0 0.0
        %1466 = vmatpush1.msra.mxu0 0.0
        %1467 = vmatprep.subr.mxu0 0.0
        %1468 = vmatpush1.msra.mxu0 0.0
        %1469 = vmatprep.subr.mxu0 0.0
        %1470 = vmatpush1.msra.mxu0 0.0
        %1471 = vmatprep.subr.mxu0 0.0
        %1472 = vmatpush1.msra.mxu0 %v1305
        %1473 = vmatprep.subr.mxu0 0.0
        %1474 = vmatpush1.msra.mxu0 %v1282
        %1475 = vmatprep.subr.mxu0 0.0
        %1476 = vmatpush1.msra.mxu0 %v1277
        %1477 = vmatprep.subr.mxu0 0.0
        %1478 = vmatpush1.msra.mxu0 %v1272
        %1479 = vmatprep.subr.mxu0 0.0
        %1480 = vmatpush1.msra.mxu0 %v1267
        %1481 = vmatprep.subr.mxu0 0.0
        %1482 = vmatpush2.msra.mxu0 0.0
        %1483 = vmatprep.subr.mxu0 0.0
        %1484 = vmatpush2.msra.mxu0 0.0
        %1485 = vmatprep.subr.mxu0 0.0
        %1486 = vmatpush2.msra.mxu0 0.0
        %1487 = vmatprep.subr.mxu0 0.0
        %1488 = vmatpush2.msra.mxu0 0.0
        %1489 = vmatprep.subr.mxu0 0.0
        %1490 = vmatpush2.msra.mxu0 0.0
        %1491 = vmatprep.subr.mxu0 0.0
        %1492 = vmatpush2.msra.mxu0 0.0
        %1493 = vmatprep.subr.mxu0 0.0
        %1494 = vmatpush2.msra.mxu0 0.0
        %1495 = vmatprep.subr.mxu0 0.0
        %1496 = vmatpush2.msra.mxu0 0.0
        %1497 = vmatprep.subr.mxu0 0.0
        %1498 = vmatpush2.msra.mxu0 0.0
        %1499 = vmatprep.subr.mxu0 0.0
        %1500 = vmatpush2.msra.mxu0 0.0
        %1501 = vmatprep.subr.mxu0 0.0
        %1502 = vmatpush2.msra.mxu0 0.0
        %1503 = vmatprep.subr.mxu0 0.0
        %1504 = vmatpush2.msra.mxu0 0.0
        %1505 = vmatprep.subr.mxu0 0.0
        %1506 = vmatpush2.msra.mxu0 0.0
        %1507 = vmatprep.subr.mxu0 0.0
        %1508 = vmatpush2.msra.mxu0 0.0
        %1509 = vmatprep.subr.mxu0 0.0
        %1510 = vmatpush2.msra.mxu0 0.0
        %1511 = vmatprep.subr.mxu0 0.0
        %1512 = vmatpush2.msra.mxu0 0.0
        %1513 = vmatprep.mubr.f32.mxu0 0.0
        %1514 = vmatmul.mubr.f32.gmra.mxu0 %v1290
        %v1515 = vpop.f32.mrf.mxu0
        %v1516 = vadd.f32 0.0, %v1515
        %v1517 = vpop.f32.mrf.mxu0
        %1518 = vdwg.mxu0
        %v1519 = vmax.f32 %v1374, 0.0
        %v1520 = vmax.f32 %v1376, 0.0
        %v1521 = vmax.f32 %v1445, 0.0
        %v1522 = vmax.f32 %v1447, 0.0
        %v1523 = vmax.f32 %v1516, 0.0
        %v1528 = vcombine.low %v1519, %v1520
        %v1529 = vcombine.low %v1521, %v1522
        %1532 = vst [vmem:[%s357] sm:$0xff] %v1528
        %1533 = vst [vmem:[%s357 + $0x8] sm:$0xff] %v1529
        %1534 = vst [vmem:[%s357 + $0x10] sm:$0xf] %v1523
        %s1535 = sand.u32 %s179, 1
        %s1536 = scalar_lea.sflag [#allocation4], %s1535
        %s1537 = sand.u32 %s179, 1
        %s1538 = smul.addr %s1537, 20
        %s1539 = scalar_lea.vmem [#allocation10], %s1538
        // Predicated region
        $region57: #{tpu_custom_call.1} parent=39 // pred_check
          %p1540 = pneg %p189
        $region58: #{tpu_custom_call.1} parent=39 // pred_check_branch
          %1542 = sbr.rel (%p1540) target = $region60
        $region59: #{tpu_custom_call.1} parent=39 // pred_region
          %s1543 = smul.u32 5, %s33
          %s1545 = ssub.s32 320, 320
          %1546 = vsyncadd %s1536, %s1545
          %s1547 = smul.addr %s32, 5
          %s1548 = sadd.s32 %s1543, %s1547
          %s1549 = smul.addr %s1548, 64
          %s1550 = scalar_lea.hbm %s5, %s1549
          %s1552 = sshll.u32 %s1539, 4
          %s1553 = int_to_ptr.vmem [resolvable:$true] %s1552
          %1555 = dma.vmem_to_hbm [thread:$0]  %s1553, 320, %s1550, %s1536
        $region60: #{tpu_custom_call.1} parent=39 // pred_fallthru
          _
      $region40: #{tpu_custom_call.1} parent=5 // pred_fallthru
        _
      %p1556 = scmp.le.s32.totalorder 2, %s23
      // Predicated region
      $region61: #{tpu_custom_call.1} parent=5 // pred_check
        %p1557 = pneg %p1556
      $region62: #{tpu_custom_call.1} parent=5 // pred_check_branch
        %1559 = sbr.rel (%p1557) target = $region64
      $region63: #{tpu_custom_call.1} parent=5 // pred_region
        %s1560 = ssub.s32 %s23, 2
        // Predicated region
        $region65: #{tpu_custom_call.1} parent=63 // pred_check
          %p1561 = pneg %p195
        $region66: #{tpu_custom_call.1} parent=63 // pred_check_branch
          %1563 = sbr.rel (%p1561) target = $region68
        $region67: #{tpu_custom_call.1} parent=63 // pred_region
          %s1564 = sand.u32 %s180, 1
          %s1565 = scalar_lea.sflag [#allocation4], %s1564
          %s1566 = sand.u32 %s180, 1
          %s1567 = smul.addr %s1566, 20
          %s1568 = scalar_lea.vmem [#allocation10], %s1567
          %1569 = dma.done %s1565, 320
        $region68: #{tpu_custom_call.1} parent=63 // pred_fallthru
          _
      $region64: #{tpu_custom_call.1} parent=5 // pred_fallthru
        _
    $region6: #{tpu_custom_call.1} parent=1 // loop_footer
      %s27 = sadd.s32 1, %s23
    $region7: #{tpu_custom_call.1} parent=1 // loop_footer_branch
      %22 = sbr.rel target = $region3
    $region8: #{tpu_custom_call.1} parent=1 // loop_exit
      _
    %1570 = vsyncpa [#allocation3], 1
    %s1571 = scalar_lea.sflag [#allocation3], 1
    %1572 = vsyncpa %s1571, 1
    %1573 = vsyncpa [#allocation6], 1
    %s1574 = scalar_lea.sflag [#allocation6], 1
    %1575 = vsyncpa %s1574, 1
    %1576 = vsyncpa [#allocation9], 1
    %s1577 = scalar_lea.sflag [#allocation9], 1
    %1578 = vsyncpa %s1577, 1
    %1579 = vsyncpa [#allocation4], 1
    %s1580 = scalar_lea.sflag [#allocation4], 1
    %1581 = vsyncpa %s1580, 1

</llo_original>
